<compile_context>
chip_gen: v5e
topology: v5e:2x2
jax: 0.10.0
libtpu: 0.0.40
codegen_flags: <defaults>
</compile_context>

<pallas_src>
import functools

import jax
import jax.numpy as jnp
from jax.experimental import pallas as pl
from jax.experimental.pallas import tpu as pltpu

EMBEDDING_DIM = 32
HIDDEN_DIM = 32
HIDDEN_PAD = 128        # H padded so each gate fills one 128-lane vreg (no cross-lane rotates)
VOCAB_SIZE = 64         # len(tags): vocab_size == tagset_size in the original script
TAGSET_SIZE = 64
TAGSET_PAD = 128        # lane-dense output width
SEQ_LEN = 8
BATCH_BLOCK = 8         # sentences per grid step (fills the 8 sublanes of a vreg)


def _lstm_tagger_kernel(T, BB, ids_ref, table_ref, whh_ref, wout_ref, bout_ref,
                        o_ref, hbuf):
    """One grid step processes BB sentences of length T.
       ids_ref  : (T*BB, 1) int32, time-major rows (row = t*BB + b)
       table_ref: (V, 4*HP) bf16  -- emb @ W_ih^T + b, gate order (i,f,o,g), i/f/o cols pre-scaled 0.5
       whh_ref  : (HP, 4*HP) bf16 -- W_hh^T, same reorder/scale, zero-padded rows & cols
       wout_ref : (HP, GP) bf16   -- hidden2tag^T, zero-padded
       bout_ref : (1, GP) f32     -- hidden2tag bias, padded cols = -1e30 (f32 epilogue required)
       o_ref    : (T*BB, GP) f32  -- log-softmax output, time-major rows
       hbuf     : (T*BB, HP) bf16 -- per-step hidden states for the fused epilogue matmul
    """
    V = table_ref.shape[0]
    HP = whh_ref.shape[0]
    TB = T * BB

    # Fused embedding gather + input projection: one-hot(ids) @ (emb @ W_ih^T + b) on the MXU.
    ids = ids_ref[...]                                               # (TB, 1) i32
    iota = jax.lax.broadcasted_iota(jnp.int32, (TB, V), 1)
    onehot = jnp.where(ids == iota, 1.0, 0.0).astype(table_ref.dtype)
    xw = jnp.dot(onehot, table_ref[...],
                 preferred_element_type=jnp.float32)                 # (TB, 4HP) f32

    whh = whh_ref[...]                                               # loop-invariant weight load

    h = jnp.zeros((BB, HP), jnp.float32)
    c = jnp.zeros((BB, HP), jnp.float32)

    # Fully unrolled recurrence: one MXU push + two EUP (tanh) launches per step.
    # sigmoid(a) = 0.5*tanh(a/2) + 0.5; the 0.5 pre-scale is folded into table/W_hh columns.
    for t in range(T):
        pre = xw[t * BB:(t + 1) * BB, :] + jnp.dot(
            h.astype(whh.dtype), whh, preferred_element_type=jnp.float32)     # (BB, 4HP) f32
        tg = jnp.tanh(pre)                                           # one EUP launch, all 4 gates
        i_g = 0.5 * tg[:, 0 * HP:1 * HP] + 0.5                       # vreg-aligned slices, VALU fixup
        f_g = 0.5 * tg[:, 1 * HP:2 * HP] + 0.5
        o_g = 0.5 * tg[:, 2 * HP:3 * HP] + 0.5
        g_g = tg[:, 3 * HP:4 * HP]
        c = f_g * c + i_g * g_g
        h = o_g * jnp.tanh(c)                                        # second EUP launch
        hbuf[t * BB:(t + 1) * BB, :] = h.astype(hbuf.dtype)          # static-index, lane-dense store

    # hidden2tag + log_softmax epilogue (padded cols carry -1e30 bias -> exp underflows to 0 in f32).
    tag = (jnp.dot(hbuf[...], wout_ref[...], preferred_element_type=jnp.float32)
           + bout_ref[...])                                          # (TB, GP) f32
    m = jnp.max(tag, axis=-1, keepdims=True)
    z = tag - m
    lse = jnp.log(jnp.sum(jnp.exp(z), axis=-1, keepdims=True))
    o_ref[...] = (z - lse).astype(o_ref.dtype)


def _reorder_gates(w):
    """PyTorch LSTM gate order (i, f, g, o) -> (i, f, o, g) along the leading 4H axis."""
    H = HIDDEN_DIM
    blocks = w.reshape(4, H, *w.shape[1:])
    return jnp.concatenate([blocks[0], blocks[1], blocks[3], blocks[2]], axis=0)


def prepare_params(params):
    """One-time weight preprocessing, hoisted out of the per-call hot path:
       gate reorder, emb @ W_ih fold (+ bias), sigmoid-via-tanh 0.5 pre-scale,
       H 32->128 and TAGSET 64->128 padding, bf16 casts for MXU operands."""
    emb, w_ih, w_hh, b_ih, b_hh, w_out, b_out = params
    H, HP = HIDDEN_DIM, HIDDEN_PAD
    V, G, GP = VOCAB_SIZE, TAGSET_SIZE, TAGSET_PAD

    w_ih_r = _reorder_gates(w_ih)                        # (4H, E)
    w_hh_r = _reorder_gates(w_hh)                        # (4H, H)
    b_r = _reorder_gates(b_ih + b_hh)                    # (4H,)

    # sigmoid(a) = 0.5*tanh(a/2) + 0.5 -> pre-scale i/f/o pre-activations by 0.5 (g unscaled).
    gate_scale = jnp.concatenate([jnp.full((3 * H,), 0.5, jnp.float32),
                                  jnp.ones((H,), jnp.float32)])      # (4H,)

    # Fuse embedding + input projection (+ bias): xw[tok] = emb[tok] @ W_ih^T + b (exact linear fold).
    table = (emb @ w_ih_r.T + b_r[None, :]) * gate_scale[None, :]    # (V, 4H) f32
    whh_t = (w_hh_r * gate_scale[:, None]).T                         # (H, 4H) f32

    # Pad each gate block H -> HP so gates land on full-vreg boundaries; padded entries are zero,
    # which keeps padded h/c lanes exactly 0 for all timesteps.
    table_p = (jnp.zeros((V, 4, HP), jnp.float32)
               .at[:, :, :H].set(table.reshape(V, 4, H))
               .reshape(V, 4 * HP).astype(jnp.bfloat16))
    whh_p = (jnp.zeros((HP, 4, HP), jnp.float32)
             .at[:H, :, :H].set(whh_t.reshape(H, 4, H))
             .reshape(HP, 4 * HP).astype(jnp.bfloat16))

    # hidden2tag: rows padded H->HP (zeros), cols padded G->GP; padded bias -1e30 (f32 epilogue only).
    wout_p = (jnp.zeros((HP, GP), jnp.float32)
              .at[:H, :G].set(w_out.T).astype(jnp.bfloat16))
    bout_p = jnp.full((1, GP), -1e30, jnp.float32).at[0, :G].set(b_out)

    return (table_p, whh_p, wout_p, bout_p)


def _forward_batch_impl(tokens, prepared):
    """tokens: (B, T) int32 -> (B, T, TAGSET_SIZE) log-probabilities."""
    table, whh, wout, bout = prepared
    B, T = tokens.shape
    BB = BATCH_BLOCK
    num_blocks = pl.cdiv(B, BB)
    Bp = num_blocks * BB
    if Bp != B:
        tokens = jnp.pad(tokens, ((0, Bp - B), (0, 0)))

    # Time-major rows within each block: row t*BB + b  <-  sentence (block*BB + b), time t.
    ids = (tokens.astype(jnp.int32)
           .reshape(num_blocks, BB, T)
           .transpose(0, 2, 1)
           .reshape(num_blocks * T * BB, 1))

    HP = whh.shape[0]
    GP = wout.shape[1]
    TB = T * BB

    out = pl.pallas_call(
        functools.partial(_lstm_tagger_kernel, T, BB),
        out_shape=jax.ShapeDtypeStruct((num_blocks * TB, GP), jnp.float32),
        grid=(num_blocks,),
        in_specs=[
            pl.BlockSpec((TB, 1), lambda i: (i, 0)),          # token ids (per batch block)
            pl.BlockSpec(table.shape, lambda i: (0, 0)),      # fused emb@W_ih table (VMEM resident)
            pl.BlockSpec(whh.shape, lambda i: (0, 0)),
            pl.BlockSpec(wout.shape, lambda i: (0, 0)),
            pl.BlockSpec(bout.shape, lambda i: (0, 0)),
        ],
        out_specs=pl.BlockSpec((TB, GP), lambda i: (i, 0)),
        scratch_shapes=[pltpu.VMEM((TB, HP), jnp.bfloat16)],
        compiler_params=pltpu.CompilerParams(
            dimension_semantics=("parallel",)),               # batch blocks over TCs (v7x megacore)
    )(ids, table, whh, wout, bout)

    out = (out.reshape(num_blocks, T, BB, GP)
              .transpose(0, 2, 1, 3)
              .reshape(Bp, T, GP))
    return out[:B, :, :TAGSET_SIZE]


lstm_tagger_forward_batch = jax.jit(_forward_batch_impl)


def lstm_tagger_forward(sentence, prepared):
    """Original-module semantics: (T,) int32 token ids -> (T, TAGSET_SIZE) log-probabilities."""
    return lstm_tagger_forward_batch(sentence[None, :], prepared)[0]


def lstm_tagger_reference(tokens, params):
    """Pure-JAX f32 reference matching the PyTorch module (gate order i, f, g, o)."""
    emb, w_ih, w_hh, b_ih, b_hh, w_out, b_out = params
    H = HIDDEN_DIM
    x = emb[tokens]                                       # (B, T, E)
    B, T, _ = x.shape
    h = jnp.zeros((B, H), jnp.float32)
    c = jnp.zeros((B, H), jnp.float32)
    hs = []
    for t in range(T):
        g = x[:, t, :] @ w_ih.T + b_ih + h @ w_hh.T + b_hh
        i_g = jax.nn.sigmoid(g[:, 0 * H:1 * H])
        f_g = jax.nn.sigmoid(g[:, 1 * H:2 * H])
        g_g = jnp.tanh(g[:, 2 * H:3 * H])
        o_g = jax.nn.sigmoid(g[:, 3 * H:4 * H])
        c = f_g * c + i_g * g_g
        h = o_g * jnp.tanh(c)
        hs.append(h)
    tag = jnp.stack(hs, axis=1) @ w_out.T + b_out
    return jax.nn.log_softmax(tag, axis=-1)


def init_params(key):
    """Deterministic parameter init matching PyTorch module shapes."""
    k_emb, k1, k2, k3, k4, k5, k6 = jax.random.split(key, 7)
    E, H, V, G = EMBEDDING_DIM, HIDDEN_DIM, VOCAB_SIZE, TAGSET_SIZE
    bound = 1.0 / jnp.sqrt(H)
    emb = jax.random.normal(k_emb, (V, E), jnp.float32)                       # nn.Embedding
    w_ih = jax.random.uniform(k1, (4 * H, E), jnp.float32, -bound, bound)     # lstm.weight_ih_l0
    w_hh = jax.random.uniform(k2, (4 * H, H), jnp.float32, -bound, bound)     # lstm.weight_hh_l0
    b_ih = jax.random.uniform(k3, (4 * H,), jnp.float32, -bound, bound)       # lstm.bias_ih_l0
    b_hh = jax.random.uniform(k4, (4 * H,), jnp.float32, -bound, bound)       # lstm.bias_hh_l0
    w_out = jax.random.uniform(k5, (G, H), jnp.float32, -bound, bound)        # hidden2tag.weight
    b_out = jax.random.uniform(k6, (G,), jnp.float32, -bound, bound)          # hidden2tag.bias
    return (emb, w_ih, w_hh, b_ih, b_hh, w_out, b_out)


# TODO(synk): training loop (CrossEntropyLoss / SGD) from the original script is host-side and
# out of scope; only the forward pass is implemented as a kernel.

if __name__ == "__main__":
    key = jax.random.PRNGKey(0)
    params = init_params(key)
    prepared = prepare_params(params)                     # one-time weight prep, off the hot path

    B = 16                                                # 2 batch blocks -> exercises parallel grid axis
    tokens = jax.random.randint(jax.random.PRNGKey(1), (B, SEQ_LEN), 0, VOCAB_SIZE,
                                dtype=jnp.int32)

    scores = lstm_tagger_forward_batch(tokens, prepared)
    jax.block_until_ready(scores)
    assert scores.shape == (B, SEQ_LEN, TAGSET_SIZE)
    # log_softmax rows should sum (in prob space) to ~1
    assert jnp.allclose(jnp.sum(jnp.exp(scores), axis=-1), 1.0, atol=1e-3)

    # Single-sentence path (original module semantics) must agree with the batched path.
    single = lstm_tagger_forward(tokens[0], prepared)
    jax.block_until_ready(single)
    assert single.shape == (SEQ_LEN, TAGSET_SIZE)
    assert jnp.allclose(single, scores[0], atol=1e-4)

    # Pure-JAX f32 reference (kernel uses bf16 matmul operands -> generous tolerance).
    ref = lstm_tagger_reference(tokens, params)
    assert float(jnp.max(jnp.abs(scores - ref))) < 0.3

    print("KERNEL_OK")
</pallas_src>

<mosaic_0001>
module attributes {stable_mosaic.version = 11 : i64} {
  func.func @_lstm_tagger_kernel(%arg0: i32, %arg1: memref<64x1xi32, #tpu.memory_space<vmem>>, %arg2: memref<64x512xbf16, #tpu.memory_space<vmem>>, %arg3: memref<128x512xbf16, #tpu.memory_space<vmem>>, %arg4: memref<128x128xbf16, #tpu.memory_space<vmem>>, %arg5: memref<1x128xf32, #tpu.memory_space<vmem>>, %arg6: memref<64x128xf32, #tpu.memory_space<vmem>>, %arg7: memref<64x128xbf16, #tpu.memory_space<vmem>>) attributes {dimension_semantics = [#tpu.dimension_semantics<parallel>], iteration_bounds = array<i64: 2>, scalar_prefetch = 0 : i64, scratch_operands = 1 : i64, tpu.core_type = #tpu.core_type<tc>, window_params = [{transform_indices = @transform_0, window_bounds = array<i64: 64, 1>}, {pipeline_mode = #tpu.pipeline_mode<synchronous>, transform_indices = @transform_1, window_bounds = array<i64: 64, 512>}, {pipeline_mode = #tpu.pipeline_mode<synchronous>, transform_indices = @transform_2, window_bounds = array<i64: 128, 512>}, {pipeline_mode = #tpu.pipeline_mode<synchronous>, transform_indices = @transform_3, window_bounds = array<i64: 128, 128>}, {pipeline_mode = #tpu.pipeline_mode<synchronous>, transform_indices = @transform_4, window_bounds = array<i64: 1, 128>}, {transform_indices = @transform_5, window_bounds = array<i64: 64, 128>}]} {
    %c0 = arith.constant 0 : index
    %c0_0 = arith.constant 0 : index
    %0 = vector.load %arg1[%c0, %c0_0] : memref<64x1xi32, #tpu.memory_space<vmem>>, vector<64x1xi32>
    %1 = tpu.iota {dimensions = array<i32: 1>} : vector<64x64xi32>
    %2 = vector.broadcast %0 : vector<64x1xi32> to vector<64x64xi32>
    %3 = arith.cmpi eq, %2, %1 : vector<64x64xi32>
    %cst = arith.constant 1.000000e+00 : f32
    %cst_1 = arith.constant 0.000000e+00 : f32
    %4 = vector.broadcast %cst : f32 to vector<64x64xf32>
    %5 = vector.broadcast %cst_1 : f32 to vector<64x64xf32>
    %6 = arith.select %3, %4, %5 : vector<64x64xi1>, vector<64x64xf32>
    %7 = arith.truncf %6 : vector<64x64xf32> to vector<64x64xbf16>
    %c0_2 = arith.constant 0 : index
    %c0_3 = arith.constant 0 : index
    %8 = vector.load %arg2[%c0_2, %c0_3] : memref<64x512xbf16, #tpu.memory_space<vmem>>, vector<64x512xbf16>
    %cst_4 = arith.constant dense<0.000000e+00> : vector<64x512xf32>
    %9 = tpu.matmul %7, %8, %cst_4 {dimension_numbers = #tpu.dot_dimension_numbers<[1], [0], [0], [1], [0, 0, 1, 1], [], []>} : vector<64x64xbf16>, vector<64x512xbf16>, vector<64x512xf32> -> vector<64x512xf32>
    %c0_5 = arith.constant 0 : index
    %c0_6 = arith.constant 0 : index
    %10 = vector.load %arg3[%c0_5, %c0_6] : memref<128x512xbf16, #tpu.memory_space<vmem>>, vector<128x512xbf16>
    %cst_7 = arith.constant 0.000000e+00 : f32
    %11 = vector.broadcast %cst_7 : f32 to vector<8x128xf32>
    %cst_8 = arith.constant 0.000000e+00 : f32
    %12 = vector.broadcast %cst_8 : f32 to vector<8x128xf32>
    %13 = vector.extract_strided_slice %9 {offsets = [0, 0], sizes = [8, 512], strides = [1, 1]} : vector<64x512xf32> to vector<8x512xf32>
    %14 = arith.truncf %11 : vector<8x128xf32> to vector<8x128xbf16>
    %cst_9 = arith.constant dense<0.000000e+00> : vector<8x512xf32>
    %15 = tpu.matmul %14, %10, %cst_9 {dimension_numbers = #tpu.dot_dimension_numbers<[1], [0], [0], [1], [0, 0, 1, 1], [], []>} : vector<8x128xbf16>, vector<128x512xbf16>, vector<8x512xf32> -> vector<8x512xf32>
    %16 = arith.addf %13, %15 : vector<8x512xf32>
    %17 = math.tanh %16 : vector<8x512xf32>
    %18 = vector.extract_strided_slice %17 {offsets = [0, 0], sizes = [8, 128], strides = [1, 1]} : vector<8x512xf32> to vector<8x128xf32>
    %cst_10 = arith.constant 5.000000e-01 : f32
    %19 = vector.broadcast %cst_10 : f32 to vector<8x128xf32>
    %20 = arith.mulf %19, %18 : vector<8x128xf32>
    %cst_11 = arith.constant 5.000000e-01 : f32
    %21 = vector.broadcast %cst_11 : f32 to vector<8x128xf32>
    %22 = arith.addf %20, %21 : vector<8x128xf32>
    %23 = vector.extract_strided_slice %17 {offsets = [0, 128], sizes = [8, 128], strides = [1, 1]} : vector<8x512xf32> to vector<8x128xf32>
    %cst_12 = arith.constant 5.000000e-01 : f32
    %24 = vector.broadcast %cst_12 : f32 to vector<8x128xf32>
    %25 = arith.mulf %24, %23 : vector<8x128xf32>
    %cst_13 = arith.constant 5.000000e-01 : f32
    %26 = vector.broadcast %cst_13 : f32 to vector<8x128xf32>
    %27 = arith.addf %25, %26 : vector<8x128xf32>
    %28 = vector.extract_strided_slice %17 {offsets = [0, 256], sizes = [8, 128], strides = [1, 1]} : vector<8x512xf32> to vector<8x128xf32>
    %cst_14 = arith.constant 5.000000e-01 : f32
    %29 = vector.broadcast %cst_14 : f32 to vector<8x128xf32>
    %30 = arith.mulf %29, %28 : vector<8x128xf32>
    %cst_15 = arith.constant 5.000000e-01 : f32
    %31 = vector.broadcast %cst_15 : f32 to vector<8x128xf32>
    %32 = arith.addf %30, %31 : vector<8x128xf32>
    %33 = vector.extract_strided_slice %17 {offsets = [0, 384], sizes = [8, 128], strides = [1, 1]} : vector<8x512xf32> to vector<8x128xf32>
    %34 = arith.mulf %27, %12 : vector<8x128xf32>
    %35 = arith.mulf %22, %33 : vector<8x128xf32>
    %36 = arith.addf %34, %35 : vector<8x128xf32>
    %37 = math.tanh %36 : vector<8x128xf32>
    %38 = arith.mulf %32, %37 : vector<8x128xf32>
    %39 = arith.truncf %38 : vector<8x128xf32> to vector<8x128xbf16>
    %c0_16 = arith.constant 0 : index
    %c0_17 = arith.constant 0 : index
    %40 = vector.load %arg7[%c0_16, %c0_17] : memref<64x128xbf16, #tpu.memory_space<vmem>>, vector<8x128xbf16>
    tpu.vector_store %arg7[%c0_16, %c0_17], %39 {strides = array<i32>} : memref<64x128xbf16, #tpu.memory_space<vmem>>, vector<8x128xbf16>,
    %41 = vector.extract_strided_slice %9 {offsets = [8, 0], sizes = [8, 512], strides = [1, 1]} : vector<64x512xf32> to vector<8x512xf32>
    %42 = arith.truncf %38 : vector<8x128xf32> to vector<8x128xbf16>
    %cst_18 = arith.constant dense<0.000000e+00> : vector<8x512xf32>
    %43 = tpu.matmul %42, %10, %cst_18 {dimension_numbers = #tpu.dot_dimension_numbers<[1], [0], [0], [1], [0, 0, 1, 1], [], []>} : vector<8x128xbf16>, vector<128x512xbf16>, vector<8x512xf32> -> vector<8x512xf32>
    %44 = arith.addf %41, %43 : vector<8x512xf32>
    %45 = math.tanh %44 : vector<8x512xf32>
    %46 = vector.extract_strided_slice %45 {offsets = [0, 0], sizes = [8, 128], strides = [1, 1]} : vector<8x512xf32> to vector<8x128xf32>
    %cst_19 = arith.constant 5.000000e-01 : f32
    %47 = vector.broadcast %cst_19 : f32 to vector<8x128xf32>
    %48 = arith.mulf %47, %46 : vector<8x128xf32>
    %cst_20 = arith.constant 5.000000e-01 : f32
    %49 = vector.broadcast %cst_20 : f32 to vector<8x128xf32>
    %50 = arith.addf %48, %49 : vector<8x128xf32>
    %51 = vector.extract_strided_slice %45 {offsets = [0, 128], sizes = [8, 128], strides = [1, 1]} : vector<8x512xf32> to vector<8x128xf32>
    %cst_21 = arith.constant 5.000000e-01 : f32
    %52 = vector.broadcast %cst_21 : f32 to vector<8x128xf32>
    %53 = arith.mulf %52, %51 : vector<8x128xf32>
    %cst_22 = arith.constant 5.000000e-01 : f32
    %54 = vector.broadcast %cst_22 : f32 to vector<8x128xf32>
    %55 = arith.addf %53, %54 : vector<8x128xf32>
    %56 = vector.extract_strided_slice %45 {offsets = [0, 256], sizes = [8, 128], strides = [1, 1]} : vector<8x512xf32> to vector<8x128xf32>
    %cst_23 = arith.constant 5.000000e-01 : f32
    %57 = vector.broadcast %cst_23 : f32 to vector<8x128xf32>
    %58 = arith.mulf %57, %56 : vector<8x128xf32>
    %cst_24 = arith.constant 5.000000e-01 : f32
    %59 = vector.broadcast %cst_24 : f32 to vector<8x128xf32>
    %60 = arith.addf %58, %59 : vector<8x128xf32>
    %61 = vector.extract_strided_slice %45 {offsets = [0, 384], sizes = [8, 128], strides = [1, 1]} : vector<8x512xf32> to vector<8x128xf32>
    %62 = arith.mulf %55, %36 : vector<8x128xf32>
    %63 = arith.mulf %50, %61 : vector<8x128xf32>
    %64 = arith.addf %62, %63 : vector<8x128xf32>
    %65 = math.tanh %64 : vector<8x128xf32>
    %66 = arith.mulf %60, %65 : vector<8x128xf32>
    %67 = arith.truncf %66 : vector<8x128xf32> to vector<8x128xbf16>
    %c8 = arith.constant 8 : index
    %c0_25 = arith.constant 0 : index
    %68 = vector.load %arg7[%c8, %c0_25] : memref<64x128xbf16, #tpu.memory_space<vmem>>, vector<8x128xbf16>
    tpu.vector_store %arg7[%c8, %c0_25], %67 {strides = array<i32>} : memref<64x128xbf16, #tpu.memory_space<vmem>>, vector<8x128xbf16>,
    %69 = vector.extract_strided_slice %9 {offsets = [16, 0], sizes = [8, 512], strides = [1, 1]} : vector<64x512xf32> to vector<8x512xf32>
    %70 = arith.truncf %66 : vector<8x128xf32> to vector<8x128xbf16>
    %cst_26 = arith.constant dense<0.000000e+00> : vector<8x512xf32>
    %71 = tpu.matmul %70, %10, %cst_26 {dimension_numbers = #tpu.dot_dimension_numbers<[1], [0], [0], [1], [0, 0, 1, 1], [], []>} : vector<8x128xbf16>, vector<128x512xbf16>, vector<8x512xf32> -> vector<8x512xf32>
    %72 = arith.addf %69, %71 : vector<8x512xf32>
    %73 = math.tanh %72 : vector<8x512xf32>
    %74 = vector.extract_strided_slice %73 {offsets = [0, 0], sizes = [8, 128], strides = [1, 1]} : vector<8x512xf32> to vector<8x128xf32>
    %cst_27 = arith.constant 5.000000e-01 : f32
    %75 = vector.broadcast %cst_27 : f32 to vector<8x128xf32>
    %76 = arith.mulf %75, %74 : vector<8x128xf32>
    %cst_28 = arith.constant 5.000000e-01 : f32
    %77 = vector.broadcast %cst_28 : f32 to vector<8x128xf32>
    %78 = arith.addf %76, %77 : vector<8x128xf32>
    %79 = vector.extract_strided_slice %73 {offsets = [0, 128], sizes = [8, 128], strides = [1, 1]} : vector<8x512xf32> to vector<8x128xf32>
    %cst_29 = arith.constant 5.000000e-01 : f32
    %80 = vector.broadcast %cst_29 : f32 to vector<8x128xf32>
    %81 = arith.mulf %80, %79 : vector<8x128xf32>
    %cst_30 = arith.constant 5.000000e-01 : f32
    %82 = vector.broadcast %cst_30 : f32 to vector<8x128xf32>
    %83 = arith.addf %81, %82 : vector<8x128xf32>
    %84 = vector.extract_strided_slice %73 {offsets = [0, 256], sizes = [8, 128], strides = [1, 1]} : vector<8x512xf32> to vector<8x128xf32>
    %cst_31 = arith.constant 5.000000e-01 : f32
    %85 = vector.broadcast %cst_31 : f32 to vector<8x128xf32>
    %86 = arith.mulf %85, %84 : vector<8x128xf32>
    %cst_32 = arith.constant 5.000000e-01 : f32
    %87 = vector.broadcast %cst_32 : f32 to vector<8x128xf32>
    %88 = arith.addf %86, %87 : vector<8x128xf32>
    %89 = vector.extract_strided_slice %73 {offsets = [0, 384], sizes = [8, 128], strides = [1, 1]} : vector<8x512xf32> to vector<8x128xf32>
    %90 = arith.mulf %83, %64 : vector<8x128xf32>
    %91 = arith.mulf %78, %89 : vector<8x128xf32>
    %92 = arith.addf %90, %91 : vector<8x128xf32>
    %93 = math.tanh %92 : vector<8x128xf32>
    %94 = arith.mulf %88, %93 : vector<8x128xf32>
    %95 = arith.truncf %94 : vector<8x128xf32> to vector<8x128xbf16>
    %c16 = arith.constant 16 : index
    %c0_33 = arith.constant 0 : index
    %96 = vector.load %arg7[%c16, %c0_33] : memref<64x128xbf16, #tpu.memory_space<vmem>>, vector<8x128xbf16>
    tpu.vector_store %arg7[%c16, %c0_33], %95 {strides = array<i32>} : memref<64x128xbf16, #tpu.memory_space<vmem>>, vector<8x128xbf16>,
    %97 = vector.extract_strided_slice %9 {offsets = [24, 0], sizes = [8, 512], strides = [1, 1]} : vector<64x512xf32> to vector<8x512xf32>
    %98 = arith.truncf %94 : vector<8x128xf32> to vector<8x128xbf16>
    %cst_34 = arith.constant dense<0.000000e+00> : vector<8x512xf32>
    %99 = tpu.matmul %98, %10, %cst_34 {dimension_numbers = #tpu.dot_dimension_numbers<[1], [0], [0], [1], [0, 0, 1, 1], [], []>} : vector<8x128xbf16>, vector<128x512xbf16>, vector<8x512xf32> -> vector<8x512xf32>
    %100 = arith.addf %97, %99 : vector<8x512xf32>
    %101 = math.tanh %100 : vector<8x512xf32>
    %102 = vector.extract_strided_slice %101 {offsets = [0, 0], sizes = [8, 128], strides = [1, 1]} : vector<8x512xf32> to vector<8x128xf32>
    %cst_35 = arith.constant 5.000000e-01 : f32
    %103 = vector.broadcast %cst_35 : f32 to vector<8x128xf32>
    %104 = arith.mulf %103, %102 : vector<8x128xf32>
    %cst_36 = arith.constant 5.000000e-01 : f32
    %105 = vector.broadcast %cst_36 : f32 to vector<8x128xf32>
    %106 = arith.addf %104, %105 : vector<8x128xf32>
    %107 = vector.extract_strided_slice %101 {offsets = [0, 128], sizes = [8, 128], strides = [1, 1]} : vector<8x512xf32> to vector<8x128xf32>
    %cst_37 = arith.constant 5.000000e-01 : f32
    %108 = vector.broadcast %cst_37 : f32 to vector<8x128xf32>
    %109 = arith.mulf %108, %107 : vector<8x128xf32>
    %cst_38 = arith.constant 5.000000e-01 : f32
    %110 = vector.broadcast %cst_38 : f32 to vector<8x128xf32>
    %111 = arith.addf %109, %110 : vector<8x128xf32>
    %112 = vector.extract_strided_slice %101 {offsets = [0, 256], sizes = [8, 128], strides = [1, 1]} : vector<8x512xf32> to vector<8x128xf32>
    %cst_39 = arith.constant 5.000000e-01 : f32
    %113 = vector.broadcast %cst_39 : f32 to vector<8x128xf32>
    %114 = arith.mulf %113, %112 : vector<8x128xf32>
    %cst_40 = arith.constant 5.000000e-01 : f32
    %115 = vector.broadcast %cst_40 : f32 to vector<8x128xf32>
    %116 = arith.addf %114, %115 : vector<8x128xf32>
    %117 = vector.extract_strided_slice %101 {offsets = [0, 384], sizes = [8, 128], strides = [1, 1]} : vector<8x512xf32> to vector<8x128xf32>
    %118 = arith.mulf %111, %92 : vector<8x128xf32>
    %119 = arith.mulf %106, %117 : vector<8x128xf32>
    %120 = arith.addf %118, %119 : vector<8x128xf32>
    %121 = math.tanh %120 : vector<8x128xf32>
    %122 = arith.mulf %116, %121 : vector<8x128xf32>
    %123 = arith.truncf %122 : vector<8x128xf32> to vector<8x128xbf16>
    %c24 = arith.constant 24 : index
    %c0_41 = arith.constant 0 : index
    %124 = vector.load %arg7[%c24, %c0_41] : memref<64x128xbf16, #tpu.memory_space<vmem>>, vector<8x128xbf16>
    tpu.vector_store %arg7[%c24, %c0_41], %123 {strides = array<i32>} : memref<64x128xbf16, #tpu.memory_space<vmem>>, vector<8x128xbf16>,
    %125 = vector.extract_strided_slice %9 {offsets = [32, 0], sizes = [8, 512], strides = [1, 1]} : vector<64x512xf32> to vector<8x512xf32>
    %126 = arith.truncf %122 : vector<8x128xf32> to vector<8x128xbf16>
    %cst_42 = arith.constant dense<0.000000e+00> : vector<8x512xf32>
    %127 = tpu.matmul %126, %10, %cst_42 {dimension_numbers = #tpu.dot_dimension_numbers<[1], [0], [0], [1], [0, 0, 1, 1], [], []>} : vector<8x128xbf16>, vector<128x512xbf16>, vector<8x512xf32> -> vector<8x512xf32>
    %128 = arith.addf %125, %127 : vector<8x512xf32>
    %129 = math.tanh %128 : vector<8x512xf32>
    %130 = vector.extract_strided_slice %129 {offsets = [0, 0], sizes = [8, 128], strides = [1, 1]} : vector<8x512xf32> to vector<8x128xf32>
    %cst_43 = arith.constant 5.000000e-01 : f32
    %131 = vector.broadcast %cst_43 : f32 to vector<8x128xf32>
    %132 = arith.mulf %131, %130 : vector<8x128xf32>
    %cst_44 = arith.constant 5.000000e-01 : f32
    %133 = vector.broadcast %cst_44 : f32 to vector<8x128xf32>
    %134 = arith.addf %132, %133 : vector<8x128xf32>
    %135 = vector.extract_strided_slice %129 {offsets = [0, 128], sizes = [8, 128], strides = [1, 1]} : vector<8x512xf32> to vector<8x128xf32>
    %cst_45 = arith.constant 5.000000e-01 : f32
    %136 = vector.broadcast %cst_45 : f32 to vector<8x128xf32>
    %137 = arith.mulf %136, %135 : vector<8x128xf32>
    %cst_46 = arith.constant 5.000000e-01 : f32
    %138 = vector.broadcast %cst_46 : f32 to vector<8x128xf32>
    %139 = arith.addf %137, %138 : vector<8x128xf32>
    %140 = vector.extract_strided_slice %129 {offsets = [0, 256], sizes = [8, 128], strides = [1, 1]} : vector<8x512xf32> to vector<8x128xf32>
    %cst_47 = arith.constant 5.000000e-01 : f32
    %141 = vector.broadcast %cst_47 : f32 to vector<8x128xf32>
    %142 = arith.mulf %141, %140 : vector<8x128xf32>
    %cst_48 = arith.constant 5.000000e-01 : f32
    %143 = vector.broadcast %cst_48 : f32 to vector<8x128xf32>
    %144 = arith.addf %142, %143 : vector<8x128xf32>
    %145 = vector.extract_strided_slice %129 {offsets = [0, 384], sizes = [8, 128], strides = [1, 1]} : vector<8x512xf32> to vector<8x128xf32>
    %146 = arith.mulf %139, %120 : vector<8x128xf32>
    %147 = arith.mulf %134, %145 : vector<8x128xf32>
    %148 = arith.addf %146, %147 : vector<8x128xf32>
    %149 = math.tanh %148 : vector<8x128xf32>
    %150 = arith.mulf %144, %149 : vector<8x128xf32>
    %151 = arith.truncf %150 : vector<8x128xf32> to vector<8x128xbf16>
    %c32 = arith.constant 32 : index
    %c0_49 = arith.constant 0 : index
    %152 = vector.load %arg7[%c32, %c0_49] : memref<64x128xbf16, #tpu.memory_space<vmem>>, vector<8x128xbf16>
    tpu.vector_store %arg7[%c32, %c0_49], %151 {strides = array<i32>} : memref<64x128xbf16, #tpu.memory_space<vmem>>, vector<8x128xbf16>,
    %153 = vector.extract_strided_slice %9 {offsets = [40, 0], sizes = [8, 512], strides = [1, 1]} : vector<64x512xf32> to vector<8x512xf32>
    %154 = arith.truncf %150 : vector<8x128xf32> to vector<8x128xbf16>
    %cst_50 = arith.constant dense<0.000000e+00> : vector<8x512xf32>
    %155 = tpu.matmul %154, %10, %cst_50 {dimension_numbers = #tpu.dot_dimension_numbers<[1], [0], [0], [1], [0, 0, 1, 1], [], []>} : vector<8x128xbf16>, vector<128x512xbf16>, vector<8x512xf32> -> vector<8x512xf32>
    %156 = arith.addf %153, %155 : vector<8x512xf32>
    %157 = math.tanh %156 : vector<8x512xf32>
    %158 = vector.extract_strided_slice %157 {offsets = [0, 0], sizes = [8, 128], strides = [1, 1]} : vector<8x512xf32> to vector<8x128xf32>
    %cst_51 = arith.constant 5.000000e-01 : f32
    %159 = vector.broadcast %cst_51 : f32 to vector<8x128xf32>
    %160 = arith.mulf %159, %158 : vector<8x128xf32>
    %cst_52 = arith.constant 5.000000e-01 : f32
    %161 = vector.broadcast %cst_52 : f32 to vector<8x128xf32>
    %162 = arith.addf %160, %161 : vector<8x128xf32>
    %163 = vector.extract_strided_slice %157 {offsets = [0, 128], sizes = [8, 128], strides = [1, 1]} : vector<8x512xf32> to vector<8x128xf32>
    %cst_53 = arith.constant 5.000000e-01 : f32
    %164 = vector.broadcast %cst_53 : f32 to vector<8x128xf32>
    %165 = arith.mulf %164, %163 : vector<8x128xf32>
    %cst_54 = arith.constant 5.000000e-01 : f32
    %166 = vector.broadcast %cst_54 : f32 to vector<8x128xf32>
    %167 = arith.addf %165, %166 : vector<8x128xf32>
    %168 = vector.extract_strided_slice %157 {offsets = [0, 256], sizes = [8, 128], strides = [1, 1]} : vector<8x512xf32> to vector<8x128xf32>
    %cst_55 = arith.constant 5.000000e-01 : f32
    %169 = vector.broadcast %cst_55 : f32 to vector<8x128xf32>
    %170 = arith.mulf %169, %168 : vector<8x128xf32>
    %cst_56 = arith.constant 5.000000e-01 : f32
    %171 = vector.broadcast %cst_56 : f32 to vector<8x128xf32>
    %172 = arith.addf %170, %171 : vector<8x128xf32>
    %173 = vector.extract_strided_slice %157 {offsets = [0, 384], sizes = [8, 128], strides = [1, 1]} : vector<8x512xf32> to vector<8x128xf32>
    %174 = arith.mulf %167, %148 : vector<8x128xf32>
    %175 = arith.mulf %162, %173 : vector<8x128xf32>
    %176 = arith.addf %174, %175 : vector<8x128xf32>
    %177 = math.tanh %176 : vector<8x128xf32>
    %178 = arith.mulf %172, %177 : vector<8x128xf32>
    %179 = arith.truncf %178 : vector<8x128xf32> to vector<8x128xbf16>
    %c40 = arith.constant 40 : index
    %c0_57 = arith.constant 0 : index
    %180 = vector.load %arg7[%c40, %c0_57] : memref<64x128xbf16, #tpu.memory_space<vmem>>, vector<8x128xbf16>
    tpu.vector_store %arg7[%c40, %c0_57], %179 {strides = array<i32>} : memref<64x128xbf16, #tpu.memory_space<vmem>>, vector<8x128xbf16>,
    %181 = vector.extract_strided_slice %9 {offsets = [48, 0], sizes = [8, 512], strides = [1, 1]} : vector<64x512xf32> to vector<8x512xf32>
    %182 = arith.truncf %178 : vector<8x128xf32> to vector<8x128xbf16>
    %cst_58 = arith.constant dense<0.000000e+00> : vector<8x512xf32>
    %183 = tpu.matmul %182, %10, %cst_58 {dimension_numbers = #tpu.dot_dimension_numbers<[1], [0], [0], [1], [0, 0, 1, 1], [], []>} : vector<8x128xbf16>, vector<128x512xbf16>, vector<8x512xf32> -> vector<8x512xf32>
    %184 = arith.addf %181, %183 : vector<8x512xf32>
    %185 = math.tanh %184 : vector<8x512xf32>
    %186 = vector.extract_strided_slice %185 {offsets = [0, 0], sizes = [8, 128], strides = [1, 1]} : vector<8x512xf32> to vector<8x128xf32>
    %cst_59 = arith.constant 5.000000e-01 : f32
    %187 = vector.broadcast %cst_59 : f32 to vector<8x128xf32>
    %188 = arith.mulf %187, %186 : vector<8x128xf32>
    %cst_60 = arith.constant 5.000000e-01 : f32
    %189 = vector.broadcast %cst_60 : f32 to vector<8x128xf32>
    %190 = arith.addf %188, %189 : vector<8x128xf32>
    %191 = vector.extract_strided_slice %185 {offsets = [0, 128], sizes = [8, 128], strides = [1, 1]} : vector<8x512xf32> to vector<8x128xf32>
    %cst_61 = arith.constant 5.000000e-01 : f32
    %192 = vector.broadcast %cst_61 : f32 to vector<8x128xf32>
    %193 = arith.mulf %192, %191 : vector<8x128xf32>
    %cst_62 = arith.constant 5.000000e-01 : f32
    %194 = vector.broadcast %cst_62 : f32 to vector<8x128xf32>
    %195 = arith.addf %193, %194 : vector<8x128xf32>
    %196 = vector.extract_strided_slice %185 {offsets = [0, 256], sizes = [8, 128], strides = [1, 1]} : vector<8x512xf32> to vector<8x128xf32>
    %cst_63 = arith.constant 5.000000e-01 : f32
    %197 = vector.broadcast %cst_63 : f32 to vector<8x128xf32>
    %198 = arith.mulf %197, %196 : vector<8x128xf32>
    %cst_64 = arith.constant 5.000000e-01 : f32
    %199 = vector.broadcast %cst_64 : f32 to vector<8x128xf32>
    %200 = arith.addf %198, %199 : vector<8x128xf32>
    %201 = vector.extract_strided_slice %185 {offsets = [0, 384], sizes = [8, 128], strides = [1, 1]} : vector<8x512xf32> to vector<8x128xf32>
    %202 = arith.mulf %195, %176 : vector<8x128xf32>
    %203 = arith.mulf %190, %201 : vector<8x128xf32>
    %204 = arith.addf %202, %203 : vector<8x128xf32>
    %205 = math.tanh %204 : vector<8x128xf32>
    %206 = arith.mulf %200, %205 : vector<8x128xf32>
    %207 = arith.truncf %206 : vector<8x128xf32> to vector<8x128xbf16>
    %c48 = arith.constant 48 : index
    %c0_65 = arith.constant 0 : index
    %208 = vector.load %arg7[%c48, %c0_65] : memref<64x128xbf16, #tpu.memory_space<vmem>>, vector<8x128xbf16>
    tpu.vector_store %arg7[%c48, %c0_65], %207 {strides = array<i32>} : memref<64x128xbf16, #tpu.memory_space<vmem>>, vector<8x128xbf16>,
    %209 = vector.extract_strided_slice %9 {offsets = [56, 0], sizes = [8, 512], strides = [1, 1]} : vector<64x512xf32> to vector<8x512xf32>
    %210 = arith.truncf %206 : vector<8x128xf32> to vector<8x128xbf16>
    %cst_66 = arith.constant dense<0.000000e+00> : vector<8x512xf32>
    %211 = tpu.matmul %210, %10, %cst_66 {dimension_numbers = #tpu.dot_dimension_numbers<[1], [0], [0], [1], [0, 0, 1, 1], [], []>} : vector<8x128xbf16>, vector<128x512xbf16>, vector<8x512xf32> -> vector<8x512xf32>
    %212 = arith.addf %209, %211 : vector<8x512xf32>
    %213 = math.tanh %212 : vector<8x512xf32>
    %214 = vector.extract_strided_slice %213 {offsets = [0, 0], sizes = [8, 128], strides = [1, 1]} : vector<8x512xf32> to vector<8x128xf32>
    %cst_67 = arith.constant 5.000000e-01 : f32
    %215 = vector.broadcast %cst_67 : f32 to vector<8x128xf32>
    %216 = arith.mulf %215, %214 : vector<8x128xf32>
    %cst_68 = arith.constant 5.000000e-01 : f32
    %217 = vector.broadcast %cst_68 : f32 to vector<8x128xf32>
    %218 = arith.addf %216, %217 : vector<8x128xf32>
    %219 = vector.extract_strided_slice %213 {offsets = [0, 128], sizes = [8, 128], strides = [1, 1]} : vector<8x512xf32> to vector<8x128xf32>
    %cst_69 = arith.constant 5.000000e-01 : f32
    %220 = vector.broadcast %cst_69 : f32 to vector<8x128xf32>
    %221 = arith.mulf %220, %219 : vector<8x128xf32>
    %cst_70 = arith.constant 5.000000e-01 : f32
    %222 = vector.broadcast %cst_70 : f32 to vector<8x128xf32>
    %223 = arith.addf %221, %222 : vector<8x128xf32>
    %224 = vector.extract_strided_slice %213 {offsets = [0, 256], sizes = [8, 128], strides = [1, 1]} : vector<8x512xf32> to vector<8x128xf32>
    %cst_71 = arith.constant 5.000000e-01 : f32
    %225 = vector.broadcast %cst_71 : f32 to vector<8x128xf32>
    %226 = arith.mulf %225, %224 : vector<8x128xf32>
    %cst_72 = arith.constant 5.000000e-01 : f32
    %227 = vector.broadcast %cst_72 : f32 to vector<8x128xf32>
    %228 = arith.addf %226, %227 : vector<8x128xf32>
    %229 = vector.extract_strided_slice %213 {offsets = [0, 384], sizes = [8, 128], strides = [1, 1]} : vector<8x512xf32> to vector<8x128xf32>
    %230 = arith.mulf %223, %204 : vector<8x128xf32>
    %231 = arith.mulf %218, %229 : vector<8x128xf32>
    %232 = arith.addf %230, %231 : vector<8x128xf32>
    %233 = math.tanh %232 : vector<8x128xf32>
    %234 = arith.mulf %228, %233 : vector<8x128xf32>
    %235 = arith.truncf %234 : vector<8x128xf32> to vector<8x128xbf16>
    %c56 = arith.constant 56 : index
    %c0_73 = arith.constant 0 : index
    %236 = vector.load %arg7[%c56, %c0_73] : memref<64x128xbf16, #tpu.memory_space<vmem>>, vector<8x128xbf16>
    tpu.vector_store %arg7[%c56, %c0_73], %235 {strides = array<i32>} : memref<64x128xbf16, #tpu.memory_space<vmem>>, vector<8x128xbf16>,
    %c0_74 = arith.constant 0 : index
    %c0_75 = arith.constant 0 : index
    %237 = vector.load %arg7[%c0_74, %c0_75] : memref<64x128xbf16, #tpu.memory_space<vmem>>, vector<64x128xbf16>
    %c0_76 = arith.constant 0 : index
    %c0_77 = arith.constant 0 : index
    %238 = vector.load %arg4[%c0_76, %c0_77] : memref<128x128xbf16, #tpu.memory_space<vmem>>, vector<128x128xbf16>
    %cst_78 = arith.constant dense<0.000000e+00> : vector<64x128xf32>
    %239 = tpu.matmul %237, %238, %cst_78 {dimension_numbers = #tpu.dot_dimension_numbers<[1], [0], [0], [1], [0, 0, 1, 1], [], []>} : vector<64x128xbf16>, vector<128x128xbf16>, vector<64x128xf32> -> vector<64x128xf32>
    %c0_79 = arith.constant 0 : index
    %c0_80 = arith.constant 0 : index
    %240 = vector.load %arg5[%c0_79, %c0_80] : memref<1x128xf32, #tpu.memory_space<vmem>>, vector<1x128xf32>
    %241 = vector.broadcast %240 : vector<1x128xf32> to vector<64x128xf32>
    %242 = arith.addf %239, %241 : vector<64x128xf32>
    %cst_81 = arith.constant dense<0xFF800000> : vector<64xf32>
    %243 = vector.multi_reduction <maximumf>, %242, %cst_81 [1] : vector<64x128xf32> to vector<64xf32>
    %244 = vector.shape_cast %243 : vector<64xf32> to vector<64x1xf32>
    %245 = vector.broadcast %244 : vector<64x1xf32> to vector<64x128xf32>
    %246 = arith.subf %242, %245 : vector<64x128xf32>
    %247 = math.exp %246 : vector<64x128xf32>
    %cst_82 = arith.constant dense<0.000000e+00> : vector<64xf32>
    %248 = vector.multi_reduction <add>, %247, %cst_82 [1] : vector<64x128xf32> to vector<64xf32>
    %249 = vector.shape_cast %248 : vector<64xf32> to vector<64x1xf32>
    %250 = math.log %249 : vector<64x1xf32>
    %251 = vector.broadcast %250 : vector<64x1xf32> to vector<64x128xf32>
    %252 = arith.subf %246, %251 : vector<64x128xf32>
    %c0_83 = arith.constant 0 : index
    %c0_84 = arith.constant 0 : index
    %253 = vector.load %arg6[%c0_83, %c0_84] : memref<64x128xf32, #tpu.memory_space<vmem>>, vector<64x128xf32>
    tpu.vector_store %arg6[%c0_83, %c0_84], %252 {strides = array<i32>} : memref<64x128xf32, #tpu.memory_space<vmem>>, vector<64x128xf32>,
    return
  }
  func.func @transform_0(%arg0: i32) -> (i32, i32) {
    %c0_i32 = arith.constant 0 : i32
    %c0_i32_0 = arith.constant 0 : i32
    return %arg0, %c0_i32 : i32, i32
  }
  func.func @transform_1(%arg0: i32) -> (i32, i32) {
    %c0_i32 = arith.constant 0 : i32
    %c0_i32_0 = arith.constant 0 : i32
    %c0_i32_1 = arith.constant 0 : i32
    return %c0_i32, %c0_i32_0 : i32, i32
  }
  func.func @transform_2(%arg0: i32) -> (i32, i32) {
    %c0_i32 = arith.constant 0 : i32
    %c0_i32_0 = arith.constant 0 : i32
    %c0_i32_1 = arith.constant 0 : i32
    return %c0_i32, %c0_i32_0 : i32, i32
  }
  func.func @transform_3(%arg0: i32) -> (i32, i32) {
    %c0_i32 = arith.constant 0 : i32
    %c0_i32_0 = arith.constant 0 : i32
    %c0_i32_1 = arith.constant 0 : i32
    return %c0_i32, %c0_i32_0 : i32, i32
  }
  func.func @transform_4(%arg0: i32) -> (i32, i32) {
    %c0_i32 = arith.constant 0 : i32
    %c0_i32_0 = arith.constant 0 : i32
    %c0_i32_1 = arith.constant 0 : i32
    return %c0_i32, %c0_i32_0 : i32, i32
  }
  func.func @transform_5(%arg0: i32) -> (i32, i32) {
    %c0_i32 = arith.constant 0 : i32
    %c0_i32_0 = arith.constant 0 : i32
    return %arg0, %c0_i32 : i32, i32
  }
}

</mosaic_0001>

<llo_original>
// kernel: _forward_batch_impl.1
$region0: #{_forward_batch_impl.1}
  #allocation0 [shape = 'u32[]', space=smem, size = 0x4, offset = 0x4, fixed_abs, tag = 'smem constant byte address 0x4 - core index']
  #allocation1 [shape = 'u32[72,128]{1,0:T(1,128)}', space=vmem, size = 0x9000, scoped, tag = 'internal scratch']
  #allocation2 [shape = 'bf16[64,128]{1,0:T(8,128)(2,1)}', space=vmem, size = 0x4000, scoped, tag = 'scratch operand']
  %s0 = inlined_call_operand.vmem [shape: s32[128,1], index: 0, kind: input, shape index: {}]
  %s1 = inlined_call_operand.vmem [shape: bf16[64,512], index: 1, kind: input, shape index: {}]
  %s2 = inlined_call_operand.hbm [shape: bf16[128,512], index: 2, kind: input, shape index: {}]
  %s3 = inlined_call_operand.vmem [shape: bf16[128,128], index: 3, kind: input, shape index: {}]
  %s4 = inlined_call_operand.vmem [shape: f32[1,128], index: 4, kind: input, shape index: {}]
  %s5 = inlined_call_operand.vmem [shape: f32[128,128], index: 5, kind: output, shape index: {}]
  %s6 = sld [smem:[#allocation0]]
  $region57: #{_forward_batch_impl.1} parent=0
    _
  %s8 = ssub.s32 1, %s6
  %s9 = scalar_select 0, %s8, %s6
  $region1: #{_forward_batch_impl.1} parent=0
    #allocation3 [shape = 'u8[131072]{0}', space=vmem, size = 0x20000, scoped, tag = 'input window, operand 2, single buffered']
    #allocation4 [shape = 's32[2]{0}', space=sflag, size = 0x8, scoped, tag = 'scoped memory for _forward_batch_impl.1']
    %10 = vsyncpa [#allocation4], 0
    loop: start=0, step=1, limit=4
    $region2: #{_forward_batch_impl.1} parent=1 // loop_pre_header
      _
    $region3: #{_forward_batch_impl.1} parent=1 // loop_header
      %s12 = sphi 0, %s16
      %p13 = scmp.ge.s32.totalorder %s12, 4
      %s22 = sphi 0, %s24
      %s25 = sphi 0, %s22
      %s26 = sphi 0, %s25
      %s42 = sphi 0, %s26
      %s46 = sphi 0, %s46
      %s48 = sphi 0, %s46
      %s49 = sphi 0, %s48
      %s63 = sphi 0, %s49
      %s67 = sphi 0, %s67
      %s69 = sphi 0, %s67
      %s70 = sphi 0, %s69
      %s84 = sphi 0, %s70
      %s88 = sphi 0, %s88
      %s90 = sphi 0, %s88
      %s91 = sphi 0, %s90
      %s105 = sphi 0, %s91
      %s109 = sphi 0, %s109
      %s111 = sphi 0, %s109
      %s112 = sphi 0, %s111
      %s126 = sphi 0, %s112
      %s132 = sphi 0, %s134
      %s135 = sphi 0, %s132
      %s136 = sphi 0, %s135
      %s152 = sphi 0, %s136
    $region4: #{_forward_batch_impl.1} parent=1 // loop_header_branch
      %15 = sbr.rel (%p13) target = $region8
    $region5: #{_forward_batch_impl.1} parent=1 // loop_body
      %s17 = ssub.s32 %s12, 1
      %s18 = ssub.s32 %s12, 2
      %s19 = sadd.s32 %s12, 1
      %s20 = ssub.s32 %s12, %s19
      %p21 = scmp.eq.s32.totalorder %s20, 0
      %s23 = sadd.s32 %s22, 1
      %s24 = scalar_select %p21, %s22, %s23
      %p27 = pneg %p21
      %p28 = scmp.eq.s32.totalorder %s12, 1
      %p29 = por %p27, %p28
      %p30 = scmp.ne.s32.totalorder %s22, %s25
      %p31 = scmp.eq.s32.totalorder %s12, 0
      %p32 = por %p30, %p31
      %p33 = scmp.ne.s32.totalorder %s22, %s25
      %p34 = scmp.eq.s32.totalorder %s17, 1
      %p35 = por %p33, %p34
      %p36 = scmp.ne.s32.totalorder %s25, %s26
      %p37 = scmp.eq.s32.totalorder %s17, 0
      %p38 = por %p36, %p37
      %p39 = scmp.ne.s32.totalorder %s25, %s26
      %p40 = scmp.eq.s32.totalorder %s18, 1
      %p41 = por %p39, %p40
      %p43 = scmp.ne.s32.totalorder %s26, %s42
      %p44 = scmp.eq.s32.totalorder %s18, 0
      %p45 = por %p43, %p44
      %s47 = sadd.s32 %s46, 1
      %p50 = scmp.eq.s32.totalorder %s12, 1
      %p51 = scmp.ne.s32.totalorder %s46, %s48
      %p52 = scmp.eq.s32.totalorder %s12, 0
      %p53 = por %p51, %p52
      %p54 = scmp.ne.s32.totalorder %s46, %s48
      %p55 = scmp.eq.s32.totalorder %s17, 1
      %p56 = por %p54, %p55
      %p57 = scmp.ne.s32.totalorder %s48, %s49
      %p58 = scmp.eq.s32.totalorder %s17, 0
      %p59 = por %p57, %p58
      %p60 = scmp.ne.s32.totalorder %s48, %s49
      %p61 = scmp.eq.s32.totalorder %s18, 1
      %p62 = por %p60, %p61
      %p64 = scmp.ne.s32.totalorder %s49, %s63
      %p65 = scmp.eq.s32.totalorder %s18, 0
      %p66 = por %p64, %p65
      %s68 = sadd.s32 %s67, 1
      %p71 = scmp.eq.s32.totalorder %s12, 1
      %p72 = scmp.ne.s32.totalorder %s67, %s69
      %p73 = scmp.eq.s32.totalorder %s12, 0
      %p74 = por %p72, %p73
      %p75 = scmp.ne.s32.totalorder %s67, %s69
      %p76 = scmp.eq.s32.totalorder %s17, 1
      %p77 = por %p75, %p76
      %p78 = scmp.ne.s32.totalorder %s69, %s70
      %p79 = scmp.eq.s32.totalorder %s17, 0
      %p80 = por %p78, %p79
      %p81 = scmp.ne.s32.totalorder %s69, %s70
      %p82 = scmp.eq.s32.totalorder %s18, 1
      %p83 = por %p81, %p82
      %p85 = scmp.ne.s32.totalorder %s70, %s84
      %p86 = scmp.eq.s32.totalorder %s18, 0
      %p87 = por %p85, %p86
      %s89 = sadd.s32 %s88, 1
      %p92 = scmp.eq.s32.totalorder %s12, 1
      %p93 = scmp.ne.s32.totalorder %s88, %s90
      %p94 = scmp.eq.s32.totalorder %s12, 0
      %p95 = por %p93, %p94
      %p96 = scmp.ne.s32.totalorder %s88, %s90
      %p97 = scmp.eq.s32.totalorder %s17, 1
      %p98 = por %p96, %p97
      %p99 = scmp.ne.s32.totalorder %s90, %s91
      %p100 = scmp.eq.s32.totalorder %s17, 0
      %p101 = por %p99, %p100
      %p102 = scmp.ne.s32.totalorder %s90, %s91
      %p103 = scmp.eq.s32.totalorder %s18, 1
      %p104 = por %p102, %p103
      %p106 = scmp.ne.s32.totalorder %s91, %s105
      %p107 = scmp.eq.s32.totalorder %s18, 0
      %p108 = por %p106, %p107
      %s110 = sadd.s32 %s109, 1
      %p113 = scmp.eq.s32.totalorder %s12, 1
      %p114 = scmp.ne.s32.totalorder %s109, %s111
      %p115 = scmp.eq.s32.totalorder %s12, 0
      %p116 = por %p114, %p115
      %p117 = scmp.ne.s32.totalorder %s109, %s111
      %p118 = scmp.eq.s32.totalorder %s17, 1
      %p119 = por %p117, %p118
      %p120 = scmp.ne.s32.totalorder %s111, %s112
      %p121 = scmp.eq.s32.totalorder %s17, 0
      %p122 = por %p120, %p121
      %p123 = scmp.ne.s32.totalorder %s111, %s112
      %p124 = scmp.eq.s32.totalorder %s18, 1
      %p125 = por %p123, %p124
      %p127 = scmp.ne.s32.totalorder %s112, %s126
      %p128 = scmp.eq.s32.totalorder %s18, 0
      %p129 = por %p127, %p128
      %s130 = ssub.s32 %s12, %s19
      %p131 = scmp.eq.s32.totalorder %s130, 0
      %s133 = sadd.s32 %s132, 1
      %s134 = scalar_select %p131, %s132, %s133
      %p137 = pneg %p131
      %p138 = scmp.eq.s32.totalorder %s12, 1
      %p139 = por %p137, %p138
      %p140 = scmp.ne.s32.totalorder %s132, %s135
      %p141 = scmp.eq.s32.totalorder %s12, 0
      %p142 = por %p140, %p141
      %p143 = scmp.ne.s32.totalorder %s132, %s135
      %p144 = scmp.eq.s32.totalorder %s17, 1
      %p145 = por %p143, %p144
      %p146 = scmp.ne.s32.totalorder %s135, %s136
      %p147 = scmp.eq.s32.totalorder %s17, 0
      %p148 = por %p146, %p147
      %p149 = scmp.ne.s32.totalorder %s135, %s136
      %p150 = scmp.eq.s32.totalorder %s18, 1
      %p151 = por %p149, %p150
      %p153 = scmp.ne.s32.totalorder %s136, %s152
      %p154 = scmp.eq.s32.totalorder %s18, 0
      %p155 = por %p153, %p154
      %p156 = scmp.le.s32.totalorder 1, %s12
      %p157 = scmp.lt.s32.totalorder %s12, 3
      %p158 = pnand %p156, %p157
      %p159 = pneg %p158
      // Predicated region
      $region9: #{_forward_batch_impl.1} parent=5 // pred_check
        _
      $region10: #{_forward_batch_impl.1} parent=5 // pred_check_branch
        %161 = sbr.rel (%p158) target = $region12
      $region11: #{_forward_batch_impl.1} parent=5 // pred_region
        %s162 = ssub.s32 %s12, 1
        // Predicated region
        $region13: #{_forward_batch_impl.1} parent=11 // pred_check
          %p163 = pneg %p59
        $region14: #{_forward_batch_impl.1} parent=11 // pred_check_branch
          %165 = sbr.rel (%p163) target = $region16
        $region15: #{_forward_batch_impl.1} parent=11 // pred_region
          _
        $region16: #{_forward_batch_impl.1} parent=11 // pred_fallthru
          _
        // Predicated region
        $region17: #{_forward_batch_impl.1} parent=11 // pred_check
          %p166 = pneg %p80
        $region18: #{_forward_batch_impl.1} parent=11 // pred_check_branch
          %168 = sbr.rel (%p166) target = $region20
        $region19: #{_forward_batch_impl.1} parent=11 // pred_region
          %170 = vsyncadd [#allocation4], 0
          %s171 = sshll.u32 %s2, 4
          %s172 = int_to_ptr.hbm [resolvable:$true] %s171
          %s173 = sshll.u32 [#allocation3], 4
          %s174 = int_to_ptr.vmem [resolvable:$true] %s173
          %179 = dma.hbm_to_vmem [thread:$0]  %s172, 4096, %s174, [#allocation4], 256, 256, 16
        $region20: #{_forward_batch_impl.1} parent=11 // pred_fallthru
          _
        // Predicated region
        $region21: #{_forward_batch_impl.1} parent=11 // pred_check
          %p180 = pneg %p101
        $region22: #{_forward_batch_impl.1} parent=11 // pred_check_branch
          %182 = sbr.rel (%p180) target = $region24
        $region23: #{_forward_batch_impl.1} parent=11 // pred_region
          _
        $region24: #{_forward_batch_impl.1} parent=11 // pred_fallthru
          _
        // Predicated region
        $region25: #{_forward_batch_impl.1} parent=11 // pred_check
          %p183 = pneg %p122
        $region26: #{_forward_batch_impl.1} parent=11 // pred_check_branch
          %185 = sbr.rel (%p183) target = $region28
        $region27: #{_forward_batch_impl.1} parent=11 // pred_region
          _
        $region28: #{_forward_batch_impl.1} parent=11 // pred_fallthru
          _
      $region12: #{_forward_batch_impl.1} parent=5 // pred_fallthru
        _
      %p186 = scmp.lt.s32.totalorder %s12, 2
      // Predicated region
      $region29: #{_forward_batch_impl.1} parent=5 // pred_check
        %p187 = pneg %p186
      $region30: #{_forward_batch_impl.1} parent=5 // pred_check_branch
        %189 = sbr.rel (%p187) target = $region32
      $region31: #{_forward_batch_impl.1} parent=5 // pred_region
        // Predicated region
        $region33: #{_forward_batch_impl.1} parent=31 // pred_check
          %p190 = pneg %p32
        $region34: #{_forward_batch_impl.1} parent=31 // pred_check_branch
          %192 = sbr.rel (%p190) target = $region36
        $region35: #{_forward_batch_impl.1} parent=31 // pred_region
          %s193 = smul.u32 8, %s12
          %p194 = scmp.lt.s32.totalorder %s193, 15
          %s195 = scalar_select %p194, %s193, 15
          %s196 = smul.addr %s195, 8
          %s197 = scalar_lea.vmem %s0, %s196
          %s198 = smul.u32 8, %s12
        $region36: #{_forward_batch_impl.1} parent=31 // pred_fallthru
          _
      $region32: #{_forward_batch_impl.1} parent=5 // pred_fallthru
        _
      %p199 = scmp.le.s32.totalorder 1, %s12
      %p200 = scmp.lt.s32.totalorder %s12, 3
      %p201 = pnand %p199, %p200
      %p202 = pneg %p201
      // Predicated region
      $region37: #{_forward_batch_impl.1} parent=5 // pred_check
        _
      $region38: #{_forward_batch_impl.1} parent=5 // pred_check_branch
        %204 = sbr.rel (%p201) target = $region40
      $region39: #{_forward_batch_impl.1} parent=5 // pred_region
        %s205 = ssub.s32 %s12, 1
        // Predicated region
        $region41: #{_forward_batch_impl.1} parent=39 // pred_check
          %p206 = pneg %p80
        $region42: #{_forward_batch_impl.1} parent=39 // pred_check_branch
          %208 = sbr.rel (%p206) target = $region44
        $region43: #{_forward_batch_impl.1} parent=39 // pred_region
          %210 = dma.done [#allocation4], 4096
        $region44: #{_forward_batch_impl.1} parent=39 // pred_fallthru
          _
        %s211 = smul.u32 8, %s17
        %p212 = scmp.lt.s32.totalorder %s211, 15
        %s213 = scalar_select %p212, %s211, 15
        %s214 = smul.addr %s213, 8
        %s215 = scalar_lea.vmem %s0, %s214
        %p216 = pneg %p38
        %p217 = pneg %p35
        %p218 = pneg %p59
        %p219 = pneg %p56
        %p220 = pneg %p80
        %p221 = pneg %p77
        %p222 = pneg %p101
        %p223 = pneg %p98
        %p224 = pneg %p122
        %p225 = pneg %p119
        %p226 = pneg %p148
        %p227 = pneg %p145
        %s228 = smul.u32 8, %s17
        %p229 = scmp.lt.s32.totalorder %s228, 15
        %s230 = scalar_select %p229, %s228, 15
        %s231 = smul.addr %s230, 8
        %s232 = scalar_lea.vmem %s5, %s231
        %s233 = smul.u32 8, %s17
        %p234 = scmp.lt.s32.totalorder %s233, 15
        %s235 = scalar_select %p234, %s233, 15
        %s236 = smul.addr %s235, 8
        %s237 = scalar_lea.vmem %s0, %s236
        %s238 = smul.u32 8, %s17
        %s239 = smul.u32 8, %s17
        %p240 = scmp.lt.s32.totalorder %s239, 15
        %s241 = scalar_select %p240, %s239, 15
        %s242 = smul.addr %s241, 8
        %s243 = scalar_lea.vmem %s5, %s242
        %s244 = smul.u32 8, %s17
        %v246 = vld [vmem:[%s237] sm:$0xff]
        %v247 = vld [vmem:[%s237 + $0x8] sm:$0xff]
        %v248 = vld [vmem:[%s237 + $0x10] sm:$0xff]
        %v249 = vld [vmem:[%s237 + $0x18] sm:$0xff]
        %v250 = vld [vmem:[%s237 + $0x20] sm:$0xff]
        %v251 = vld [vmem:[%s237 + $0x28] sm:$0xff]
        %v252 = vld [vmem:[%s237 + $0x30] sm:$0xff]
        %v253 = vld [vmem:[%s237 + $0x38] sm:$0xff]
        %v254 = vlaneseq
        %v255 = vand.u32 %v254, 127
        %256 = vset.pattern.permute.xlu0 0
        %257 = vperm.xlu0 %256, %v246
        %v258 = vpop.permute.xlu0 %257
        %259 = vset.pattern.permute.xlu0 0
        %260 = vperm.xlu0 %259, %v247
        %v261 = vpop.permute.xlu0 %260
        %262 = vset.pattern.permute.xlu0 0
        %263 = vperm.xlu0 %262, %v248
        %v264 = vpop.permute.xlu0 %263
        %265 = vset.pattern.permute.xlu0 0
        %266 = vperm.xlu0 %265, %v249
        %v267 = vpop.permute.xlu0 %266
        %268 = vset.pattern.permute.xlu0 0
        %269 = vperm.xlu0 %268, %v250
        %v270 = vpop.permute.xlu0 %269
        %271 = vset.pattern.permute.xlu0 0
        %272 = vperm.xlu0 %271, %v251
        %v273 = vpop.permute.xlu0 %272
        %274 = vset.pattern.permute.xlu0 0
        %275 = vperm.xlu0 %274, %v252
        %v276 = vpop.permute.xlu0 %275
        %277 = vset.pattern.permute.xlu0 0
        %278 = vperm.xlu0 %277, %v253
        %v279 = vpop.permute.xlu0 %278
        %vm280 = vcmp.eq.s32.totalorder %v258, %v255
        %vm281 = vcmp.eq.s32.totalorder %v261, %v255
        %vm282 = vcmp.eq.s32.totalorder %v264, %v255
        %vm283 = vcmp.eq.s32.totalorder %v267, %v255
        %vm284 = vcmp.eq.s32.totalorder %v270, %v255
        %vm285 = vcmp.eq.s32.totalorder %v273, %v255
        %vm286 = vcmp.eq.s32.totalorder %v276, %v255
        %vm287 = vcmp.eq.s32.totalorder %v279, %v255
        %v288 = vsel %vm280, 1.0, 0.0
        %v289 = vsel %vm281, 1.0, 0.0
        %v290 = vsel %vm282, 1.0, 0.0
        %v291 = vsel %vm283, 1.0, 0.0
        %v292 = vsel %vm284, 1.0, 0.0
        %v293 = vsel %vm285, 1.0, 0.0
        %v294 = vsel %vm286, 1.0, 0.0
        %v295 = vsel %vm287, 1.0, 0.0
        %v296 = vpack.c.bf16 %v289, %v288
        %v297 = vpack.c.bf16 %v291, %v290
        %v298 = vpack.c.bf16 %v293, %v292
        %v299 = vpack.c.bf16 %v295, %v294
        %v300 = vld [vmem:[%s1] sm:$0xff]
        %v301 = vld [vmem:[%s1 + $0x8] sm:$0xff]
        %v302 = vld [vmem:[%s1 + $0x10] sm:$0xff]
        %v303 = vld [vmem:[%s1 + $0x18] sm:$0xff]
        %v304 = vld [vmem:[%s1 + $0x20] sm:$0xff]
        %v305 = vld [vmem:[%s1 + $0x28] sm:$0xff]
        %v306 = vld [vmem:[%s1 + $0x30] sm:$0xff]
        %v307 = vld [vmem:[%s1 + $0x38] sm:$0xff]
        %v308 = vld [vmem:[%s1 + $0x40] sm:$0xff]
        %v309 = vld [vmem:[%s1 + $0x48] sm:$0xff]
        %v310 = vld [vmem:[%s1 + $0x50] sm:$0xff]
        %v311 = vld [vmem:[%s1 + $0x58] sm:$0xff]
        %v312 = vld [vmem:[%s1 + $0x60] sm:$0xff]
        %v313 = vld [vmem:[%s1 + $0x68] sm:$0xff]
        %v314 = vld [vmem:[%s1 + $0x70] sm:$0xff]
        %v315 = vld [vmem:[%s1 + $0x78] sm:$0xff]
        %v332 = vunpack.c.l.b16 %v300
        %v333 = vunpack.c.h.b16 %v300
        %v334 = vunpack.c.l.b16 %v301
        %v335 = vunpack.c.h.b16 %v301
        %v336 = vunpack.c.l.b16 %v302
        %v337 = vunpack.c.h.b16 %v302
        %v338 = vunpack.c.l.b16 %v303
        %v339 = vunpack.c.h.b16 %v303
        %v340 = vunpack.c.l.b16 %v304
        %v341 = vunpack.c.h.b16 %v304
        %v342 = vunpack.c.l.b16 %v305
        %v343 = vunpack.c.h.b16 %v305
        %v344 = vunpack.c.l.b16 %v306
        %v345 = vunpack.c.h.b16 %v306
        %v346 = vunpack.c.l.b16 %v307
        %v347 = vunpack.c.h.b16 %v307
        %v348 = vunpack.c.l.b16 %v308
        %v349 = vunpack.c.h.b16 %v308
        %v350 = vunpack.c.l.b16 %v309
        %v351 = vunpack.c.h.b16 %v309
        %v352 = vunpack.c.l.b16 %v310
        %v353 = vunpack.c.h.b16 %v310
        %v354 = vunpack.c.l.b16 %v311
        %v355 = vunpack.c.h.b16 %v311
        %v356 = vunpack.c.l.b16 %v312
        %v357 = vunpack.c.h.b16 %v312
        %v358 = vunpack.c.l.b16 %v313
        %v359 = vunpack.c.h.b16 %v313
        %v360 = vunpack.c.l.b16 %v314
        %v361 = vunpack.c.h.b16 %v314
        %v362 = vunpack.c.l.b16 %v315
        %v363 = vunpack.c.h.b16 %v315
        %v364 = vpack.c.b16 %v336, %v332
        %v365 = vpack.c.b16 %v337, %v333
        %v366 = vpack.c.b16 %v338, %v334
        %v367 = vpack.c.b16 %v339, %v335
        %v368 = vpack.c.b16 %v344, %v340
        %v369 = vpack.c.b16 %v345, %v341
        %v370 = vpack.c.b16 %v346, %v342
        %v371 = vpack.c.b16 %v347, %v343
        %v372 = vpack.c.b16 %v352, %v348
        %v373 = vpack.c.b16 %v353, %v349
        %v374 = vpack.c.b16 %v354, %v350
        %v375 = vpack.c.b16 %v355, %v351
        %v376 = vpack.c.b16 %v360, %v356
        %v377 = vpack.c.b16 %v361, %v357
        %v378 = vpack.c.b16 %v362, %v358
        %v379 = vpack.c.b16 %v363, %v359
        %vm396 = vcmask 523264
        %v398 = vsel %vm396, %v296, 0
        %v401 = vsel %vm396, %v297, 0
        %v404 = vsel %vm396, %v298, 0
        %v407 = vsel %vm396, %v299, 0
        %409 = vmatpush.bf16.msra.mxu0 0
        %410 = vmatpush.bf16.msra.mxu0 0
        %411 = vmatpush.bf16.msra.mxu0 0
        %412 = vmatpush.bf16.msra.mxu0 0
        %413 = vmatpush.bf16.msra.mxu0 %v376
        %414 = vmatpush.bf16.msra.mxu0 %v372
        %415 = vmatpush.bf16.msra.mxu0 %v368
        %416 = vmatpush.bf16.msra.mxu0 %v364
        %417 = vmatmul.bf16.gmra.mxu0 %v398
        %v418 = vpop.f32.mrf.mxu0
        %v419 = vadd.f32 0.0, %v418
        %v420 = vpop.f32.mrf.mxu0
        %v421 = vadd.f32 0.0, %v420
        %422 = vmatmul.bf16.gmra.mxu0 %v401
        %v423 = vpop.f32.mrf.mxu0
        %v424 = vadd.f32 0.0, %v423
        %v425 = vpop.f32.mrf.mxu0
        %v426 = vadd.f32 0.0, %v425
        %427 = vmatmul.bf16.gmra.mxu0 %v404
        %v428 = vpop.f32.mrf.mxu0
        %v429 = vadd.f32 0.0, %v428
        %v430 = vpop.f32.mrf.mxu0
        %v431 = vadd.f32 0.0, %v430
        %432 = vmatmul.bf16.gmra.mxu0 %v407
        %v433 = vpop.f32.mrf.mxu0
        %v434 = vadd.f32 0.0, %v433
        %v435 = vpop.f32.mrf.mxu0
        %v436 = vadd.f32 0.0, %v435
        %437 = vdwg.mxu0
        %438 = vmatpush.bf16.msra.mxu0 0
        %439 = vmatpush.bf16.msra.mxu0 0
        %440 = vmatpush.bf16.msra.mxu0 0
        %441 = vmatpush.bf16.msra.mxu0 0
        %442 = vmatpush.bf16.msra.mxu0 %v377
        %443 = vmatpush.bf16.msra.mxu0 %v373
        %444 = vmatpush.bf16.msra.mxu0 %v369
        %445 = vmatpush.bf16.msra.mxu0 %v365
        %446 = vmatmul.bf16.gmra.mxu0 %v398
        %v447 = vpop.f32.mrf.mxu0
        %v448 = vadd.f32 0.0, %v447
        %v449 = vpop.f32.mrf.mxu0
        %v450 = vadd.f32 0.0, %v449
        %451 = vmatmul.bf16.gmra.mxu0 %v401
        %v452 = vpop.f32.mrf.mxu0
        %v453 = vadd.f32 0.0, %v452
        %v454 = vpop.f32.mrf.mxu0
        %v455 = vadd.f32 0.0, %v454
        %456 = vmatmul.bf16.gmra.mxu0 %v404
        %v457 = vpop.f32.mrf.mxu0
        %v458 = vadd.f32 0.0, %v457
        %v459 = vpop.f32.mrf.mxu0
        %v460 = vadd.f32 0.0, %v459
        %461 = vmatmul.bf16.gmra.mxu0 %v407
        %v462 = vpop.f32.mrf.mxu0
        %v463 = vadd.f32 0.0, %v462
        %v464 = vpop.f32.mrf.mxu0
        %v465 = vadd.f32 0.0, %v464
        %466 = vdwg.mxu0
        %467 = vmatpush.bf16.msra.mxu0 0
        %468 = vmatpush.bf16.msra.mxu0 0
        %469 = vmatpush.bf16.msra.mxu0 0
        %470 = vmatpush.bf16.msra.mxu0 0
        %471 = vmatpush.bf16.msra.mxu0 %v378
        %472 = vmatpush.bf16.msra.mxu0 %v374
        %473 = vmatpush.bf16.msra.mxu0 %v370
        %474 = vmatpush.bf16.msra.mxu0 %v366
        %475 = vmatmul.bf16.gmra.mxu0 %v398
        %v476 = vpop.f32.mrf.mxu0
        %v477 = vadd.f32 0.0, %v476
        %v478 = vpop.f32.mrf.mxu0
        %v479 = vadd.f32 0.0, %v478
        %480 = vmatmul.bf16.gmra.mxu0 %v401
        %v481 = vpop.f32.mrf.mxu0
        %v482 = vadd.f32 0.0, %v481
        %v483 = vpop.f32.mrf.mxu0
        %v484 = vadd.f32 0.0, %v483
        %485 = vmatmul.bf16.gmra.mxu0 %v404
        %v486 = vpop.f32.mrf.mxu0
        %v487 = vadd.f32 0.0, %v486
        %v488 = vpop.f32.mrf.mxu0
        %v489 = vadd.f32 0.0, %v488
        %490 = vmatmul.bf16.gmra.mxu0 %v407
        %v491 = vpop.f32.mrf.mxu0
        %v492 = vadd.f32 0.0, %v491
        %v493 = vpop.f32.mrf.mxu0
        %v494 = vadd.f32 0.0, %v493
        %495 = vdwg.mxu0
        %496 = vmatpush.bf16.msra.mxu0 0
        %497 = vmatpush.bf16.msra.mxu0 0
        %498 = vmatpush.bf16.msra.mxu0 0
        %499 = vmatpush.bf16.msra.mxu0 0
        %500 = vmatpush.bf16.msra.mxu0 %v379
        %501 = vmatpush.bf16.msra.mxu0 %v375
        %502 = vmatpush.bf16.msra.mxu0 %v371
        %503 = vmatpush.bf16.msra.mxu0 %v367
        %504 = vmatmul.bf16.gmra.mxu0 %v398
        %v505 = vpop.f32.mrf.mxu0
        %v506 = vadd.f32 0.0, %v505
        %v507 = vpop.f32.mrf.mxu0
        %v508 = vadd.f32 0.0, %v507
        %509 = vmatmul.bf16.gmra.mxu0 %v401
        %v510 = vpop.f32.mrf.mxu0
        %v511 = vadd.f32 0.0, %v510
        %v512 = vpop.f32.mrf.mxu0
        %v513 = vadd.f32 0.0, %v512
        %514 = vmatmul.bf16.gmra.mxu0 %v404
        %v515 = vpop.f32.mrf.mxu0
        %v516 = vadd.f32 0.0, %v515
        %v517 = vpop.f32.mrf.mxu0
        %v518 = vadd.f32 0.0, %v517
        %519 = vmatmul.bf16.gmra.mxu0 %v407
        %v520 = vpop.f32.mrf.mxu0
        %v521 = vadd.f32 0.0, %v520
        %v522 = vpop.f32.mrf.mxu0
        %v523 = vadd.f32 0.0, %v522
        %524 = vdwg.mxu0
        %v525 = vld [vmem:[#allocation3] sm:$0xff]
        %v526 = vld [vmem:[#allocation3 + $0x8] sm:$0xff]
        %v527 = vld [vmem:[#allocation3 + $0x10] sm:$0xff]
        %v528 = vld [vmem:[#allocation3 + $0x18] sm:$0xff]
        %v529 = vld [vmem:[#allocation3 + $0x20] sm:$0xff]
        %v530 = vld [vmem:[#allocation3 + $0x28] sm:$0xff]
        %v531 = vld [vmem:[#allocation3 + $0x30] sm:$0xff]
        %v532 = vld [vmem:[#allocation3 + $0x38] sm:$0xff]
        %v533 = vld [vmem:[#allocation3 + $0x40] sm:$0xff]
        %v534 = vld [vmem:[#allocation3 + $0x48] sm:$0xff]
        %v535 = vld [vmem:[#allocation3 + $0x50] sm:$0xff]
        %v536 = vld [vmem:[#allocation3 + $0x58] sm:$0xff]
        %v537 = vld [vmem:[#allocation3 + $0x60] sm:$0xff]
        %v538 = vld [vmem:[#allocation3 + $0x68] sm:$0xff]
        %v539 = vld [vmem:[#allocation3 + $0x70] sm:$0xff]
        %v540 = vld [vmem:[#allocation3 + $0x78] sm:$0xff]
        %v541 = vld [vmem:[#allocation3 + $0x80] sm:$0xff]
        %v542 = vld [vmem:[#allocation3 + $0x88] sm:$0xff]
        %v543 = vld [vmem:[#allocation3 + $0x90] sm:$0xff]
        %v544 = vld [vmem:[#allocation3 + $0x98] sm:$0xff]
        %v545 = vld [vmem:[#allocation3 + $0xa0] sm:$0xff]
        %v546 = vld [vmem:[#allocation3 + $0xa8] sm:$0xff]
        %v547 = vld [vmem:[#allocation3 + $0xb0] sm:$0xff]
        %v548 = vld [vmem:[#allocation3 + $0xb8] sm:$0xff]
        %v549 = vld [vmem:[#allocation3 + $0xc0] sm:$0xff]
        %v550 = vld [vmem:[#allocation3 + $0xc8] sm:$0xff]
        %v551 = vld [vmem:[#allocation3 + $0xd0] sm:$0xff]
        %v552 = vld [vmem:[#allocation3 + $0xd8] sm:$0xff]
        %v553 = vld [vmem:[#allocation3 + $0xe0] sm:$0xff]
        %v554 = vld [vmem:[#allocation3 + $0xe8] sm:$0xff]
        %v555 = vld [vmem:[#allocation3 + $0xf0] sm:$0xff]
        %v556 = vld [vmem:[#allocation3 + $0xf8] sm:$0xff]
        %v589 = vunpack.c.l.b16 %v525
        %v590 = vunpack.c.h.b16 %v525
        %v591 = vunpack.c.l.b16 %v526
        %v592 = vunpack.c.h.b16 %v526
        %v593 = vunpack.c.l.b16 %v527
        %v594 = vunpack.c.h.b16 %v527
        %v595 = vunpack.c.l.b16 %v528
        %v596 = vunpack.c.h.b16 %v528
        %v597 = vunpack.c.l.b16 %v529
        %v598 = vunpack.c.h.b16 %v529
        %v599 = vunpack.c.l.b16 %v530
        %v600 = vunpack.c.h.b16 %v530
        %v601 = vunpack.c.l.b16 %v531
        %v602 = vunpack.c.h.b16 %v531
        %v603 = vunpack.c.l.b16 %v532
        %v604 = vunpack.c.h.b16 %v532
        %v605 = vunpack.c.l.b16 %v533
        %v606 = vunpack.c.h.b16 %v533
        %v607 = vunpack.c.l.b16 %v534
        %v608 = vunpack.c.h.b16 %v534
        %v609 = vunpack.c.l.b16 %v535
        %v610 = vunpack.c.h.b16 %v535
        %v611 = vunpack.c.l.b16 %v536
        %v612 = vunpack.c.h.b16 %v536
        %v613 = vunpack.c.l.b16 %v537
        %v614 = vunpack.c.h.b16 %v537
        %v615 = vunpack.c.l.b16 %v538
        %v616 = vunpack.c.h.b16 %v538
        %v617 = vunpack.c.l.b16 %v539
        %v618 = vunpack.c.h.b16 %v539
        %v619 = vunpack.c.l.b16 %v540
        %v620 = vunpack.c.h.b16 %v540
        %v621 = vunpack.c.l.b16 %v541
        %v622 = vunpack.c.h.b16 %v541
        %v623 = vunpack.c.l.b16 %v542
        %v624 = vunpack.c.h.b16 %v542
        %v625 = vunpack.c.l.b16 %v543
        %v626 = vunpack.c.h.b16 %v543
        %v627 = vunpack.c.l.b16 %v544
        %v628 = vunpack.c.h.b16 %v544
        %v629 = vunpack.c.l.b16 %v545
        %v630 = vunpack.c.h.b16 %v545
        %v631 = vunpack.c.l.b16 %v546
        %v632 = vunpack.c.h.b16 %v546
        %v633 = vunpack.c.l.b16 %v547
        %v634 = vunpack.c.h.b16 %v547
        %v635 = vunpack.c.l.b16 %v548
        %v636 = vunpack.c.h.b16 %v548
        %v637 = vunpack.c.l.b16 %v549
        %v638 = vunpack.c.h.b16 %v549
        %v639 = vunpack.c.l.b16 %v550
        %v640 = vunpack.c.h.b16 %v550
        %v641 = vunpack.c.l.b16 %v551
        %v642 = vunpack.c.h.b16 %v551
        %v643 = vunpack.c.l.b16 %v552
        %v644 = vunpack.c.h.b16 %v552
        %v645 = vunpack.c.l.b16 %v553
        %v646 = vunpack.c.h.b16 %v553
        %v647 = vunpack.c.l.b16 %v554
        %v648 = vunpack.c.h.b16 %v554
        %v649 = vunpack.c.l.b16 %v555
        %v650 = vunpack.c.h.b16 %v555
        %v651 = vunpack.c.l.b16 %v556
        %v652 = vunpack.c.h.b16 %v556
        %v653 = vpack.c.b16 %v593, %v589
        %v654 = vpack.c.b16 %v594, %v590
        %v655 = vpack.c.b16 %v595, %v591
        %v656 = vpack.c.b16 %v596, %v592
        %v657 = vpack.c.b16 %v601, %v597
        %v658 = vpack.c.b16 %v602, %v598
        %v659 = vpack.c.b16 %v603, %v599
        %v660 = vpack.c.b16 %v604, %v600
        %v661 = vpack.c.b16 %v609, %v605
        %v662 = vpack.c.b16 %v610, %v606
        %v663 = vpack.c.b16 %v611, %v607
        %v664 = vpack.c.b16 %v612, %v608
        %v665 = vpack.c.b16 %v617, %v613
        %v666 = vpack.c.b16 %v618, %v614
        %v667 = vpack.c.b16 %v619, %v615
        %v668 = vpack.c.b16 %v620, %v616
        %v669 = vpack.c.b16 %v625, %v621
        %v670 = vpack.c.b16 %v626, %v622
        %v671 = vpack.c.b16 %v627, %v623
        %v672 = vpack.c.b16 %v628, %v624
        %v673 = vpack.c.b16 %v633, %v629
        %v674 = vpack.c.b16 %v634, %v630
        %v675 = vpack.c.b16 %v635, %v631
        %v676 = vpack.c.b16 %v636, %v632
        %v677 = vpack.c.b16 %v641, %v637
        %v678 = vpack.c.b16 %v642, %v638
        %v679 = vpack.c.b16 %v643, %v639
        %v680 = vpack.c.b16 %v644, %v640
        %v681 = vpack.c.b16 %v649, %v645
        %v682 = vpack.c.b16 %v650, %v646
        %v683 = vpack.c.b16 %v651, %v647
        %v684 = vpack.c.b16 %v652, %v648
        %717 = vmatpush.bf16.msra.mxu0 %v681
        %718 = vmatpush.bf16.msra.mxu0 %v677
        %719 = vmatpush.bf16.msra.mxu0 %v673
        %720 = vmatpush.bf16.msra.mxu0 %v669
        %721 = vmatpush.bf16.msra.mxu0 %v665
        %722 = vmatpush.bf16.msra.mxu0 %v661
        %723 = vmatpush.bf16.msra.mxu0 %v657
        %724 = vmatpush.bf16.msra.mxu0 %v653
        %725 = vmatmul.bf16.gmra.mxu0 0
        %v726 = vpop.f32.mrf.mxu0
        %v727 = vadd.f32 0.0, %v726
        %v728 = vpop.f32.mrf.mxu0
        %729 = vdwg.mxu0
        %730 = vmatpush.bf16.msra.mxu0 %v682
        %731 = vmatpush.bf16.msra.mxu0 %v678
        %732 = vmatpush.bf16.msra.mxu0 %v674
        %733 = vmatpush.bf16.msra.mxu0 %v670
        %734 = vmatpush.bf16.msra.mxu0 %v666
        %735 = vmatpush.bf16.msra.mxu0 %v662
        %736 = vmatpush.bf16.msra.mxu0 %v658
        %737 = vmatpush.bf16.msra.mxu0 %v654
        %738 = vmatmul.bf16.gmra.mxu0 0
        %v739 = vpop.f32.mrf.mxu0
        %v740 = vadd.f32 0.0, %v739
        %v741 = vpop.f32.mrf.mxu0
        %742 = vdwg.mxu0
        %743 = vmatpush.bf16.msra.mxu0 %v683
        %744 = vmatpush.bf16.msra.mxu0 %v679
        %745 = vmatpush.bf16.msra.mxu0 %v675
        %746 = vmatpush.bf16.msra.mxu0 %v671
        %747 = vmatpush.bf16.msra.mxu0 %v667
        %748 = vmatpush.bf16.msra.mxu0 %v663
        %749 = vmatpush.bf16.msra.mxu0 %v659
        %750 = vmatpush.bf16.msra.mxu0 %v655
        %751 = vmatmul.bf16.gmra.mxu0 0
        %v752 = vpop.f32.mrf.mxu0
        %v753 = vadd.f32 0.0, %v752
        %v754 = vpop.f32.mrf.mxu0
        %755 = vdwg.mxu0
        %756 = vmatpush.bf16.msra.mxu0 %v684
        %757 = vmatpush.bf16.msra.mxu0 %v680
        %758 = vmatpush.bf16.msra.mxu0 %v676
        %759 = vmatpush.bf16.msra.mxu0 %v672
        %760 = vmatpush.bf16.msra.mxu0 %v668
        %761 = vmatpush.bf16.msra.mxu0 %v664
        %762 = vmatpush.bf16.msra.mxu0 %v660
        %763 = vmatpush.bf16.msra.mxu0 %v656
        %764 = vmatmul.bf16.gmra.mxu0 0
        %v765 = vpop.f32.mrf.mxu0
        %v766 = vadd.f32 0.0, %v765
        %v767 = vpop.f32.mrf.mxu0
        %768 = vdwg.mxu0
        %v769 = vadd.f32 %v419, %v727
        %v770 = vadd.f32 %v448, %v740
        %v771 = vadd.f32 %v477, %v753
        %v772 = vadd.f32 %v506, %v766
        %v773 = vtanh.pop %v769
        %v774 = vtanh.pop %v770
        %v775 = vtanh.pop %v771
        %v776 = vtanh.pop %v772
        %v777 = vmul.f32 %v773, 0.5
        %v778 = vadd.f32 %v777, 0.5
        %v779 = vmul.f32 %v774, 0.5
        %v780 = vadd.f32 %v779, 0.5
        %v781 = vmul.f32 %v775, 0.5
        %v782 = vadd.f32 %v781, 0.5
        %v783 = vmul.f32 %v780, 0.0
        %v784 = vmul.f32 %v778, %v776
        %v785 = vadd.f32 %v783, %v784
        %v786 = vtanh.pop %v785
        %v787 = vmul.f32 %v782, %v786
        %v788 = vpack.c.bf16 %v787, %v787
        %789 = vst [vmem:[#allocation2] sm:$0xf] %v788
        %790 = vmatpush.bf16.msra.mxu0 %v681
        %791 = vmatpush.bf16.msra.mxu0 %v677
        %792 = vmatpush.bf16.msra.mxu0 %v673
        %793 = vmatpush.bf16.msra.mxu0 %v669
        %794 = vmatpush.bf16.msra.mxu0 %v665
        %795 = vmatpush.bf16.msra.mxu0 %v661
        %796 = vmatpush.bf16.msra.mxu0 %v657
        %797 = vmatpush.bf16.msra.mxu0 %v653
        %798 = vmatmul.bf16.gmra.mxu0 %v788
        %v799 = vpop.f32.mrf.mxu0
        %v800 = vadd.f32 0.0, %v799
        %v801 = vpop.f32.mrf.mxu0
        %802 = vdwg.mxu0
        %803 = vmatpush.bf16.msra.mxu0 %v682
        %804 = vmatpush.bf16.msra.mxu0 %v678
        %805 = vmatpush.bf16.msra.mxu0 %v674
        %806 = vmatpush.bf16.msra.mxu0 %v670
        %807 = vmatpush.bf16.msra.mxu0 %v666
        %808 = vmatpush.bf16.msra.mxu0 %v662
        %809 = vmatpush.bf16.msra.mxu0 %v658
        %810 = vmatpush.bf16.msra.mxu0 %v654
        %811 = vmatmul.bf16.gmra.mxu0 %v788
        %v812 = vpop.f32.mrf.mxu0
        %v813 = vadd.f32 0.0, %v812
        %v814 = vpop.f32.mrf.mxu0
        %815 = vdwg.mxu0
        %816 = vmatpush.bf16.msra.mxu0 %v683
        %817 = vmatpush.bf16.msra.mxu0 %v679
        %818 = vmatpush.bf16.msra.mxu0 %v675
        %819 = vmatpush.bf16.msra.mxu0 %v671
        %820 = vmatpush.bf16.msra.mxu0 %v667
        %821 = vmatpush.bf16.msra.mxu0 %v663
        %822 = vmatpush.bf16.msra.mxu0 %v659
        %823 = vmatpush.bf16.msra.mxu0 %v655
        %824 = vmatmul.bf16.gmra.mxu0 %v788
        %v825 = vpop.f32.mrf.mxu0
        %v826 = vadd.f32 0.0, %v825
        %v827 = vpop.f32.mrf.mxu0
        %828 = vdwg.mxu0
        %829 = vmatpush.bf16.msra.mxu0 %v684
        %830 = vmatpush.bf16.msra.mxu0 %v680
        %831 = vmatpush.bf16.msra.mxu0 %v676
        %832 = vmatpush.bf16.msra.mxu0 %v672
        %833 = vmatpush.bf16.msra.mxu0 %v668
        %834 = vmatpush.bf16.msra.mxu0 %v664
        %835 = vmatpush.bf16.msra.mxu0 %v660
        %836 = vmatpush.bf16.msra.mxu0 %v656
        %837 = vmatmul.bf16.gmra.mxu0 %v788
        %v838 = vpop.f32.mrf.mxu0
        %v839 = vadd.f32 0.0, %v838
        %v840 = vpop.f32.mrf.mxu0
        %841 = vdwg.mxu0
        %v842 = vadd.f32 %v421, %v800
        %v843 = vadd.f32 %v450, %v813
        %v844 = vadd.f32 %v479, %v826
        %v845 = vadd.f32 %v508, %v839
        %v846 = vtanh.pop %v842
        %v847 = vtanh.pop %v843
        %v848 = vtanh.pop %v844
        %v849 = vtanh.pop %v845
        %v850 = vmul.f32 %v846, 0.5
        %v851 = vadd.f32 %v850, 0.5
        %v852 = vmul.f32 %v847, 0.5
        %v853 = vadd.f32 %v852, 0.5
        %v854 = vmul.f32 %v848, 0.5
        %v855 = vadd.f32 %v854, 0.5
        %v856 = vmul.f32 %v853, %v785
        %v857 = vmul.f32 %v851, %v849
        %v858 = vadd.f32 %v856, %v857
        %v859 = vtanh.pop %v858
        %v860 = vmul.f32 %v855, %v859
        %v861 = vpack.c.bf16 %v860, %v860
        %862 = vst [vmem:[#allocation2 + $0x4] sm:$0xf] %v861
        %863 = vmatpush.bf16.msra.mxu0 %v681
        %864 = vmatpush.bf16.msra.mxu0 %v677
        %865 = vmatpush.bf16.msra.mxu0 %v673
        %866 = vmatpush.bf16.msra.mxu0 %v669
        %867 = vmatpush.bf16.msra.mxu0 %v665
        %868 = vmatpush.bf16.msra.mxu0 %v661
        %869 = vmatpush.bf16.msra.mxu0 %v657
        %870 = vmatpush.bf16.msra.mxu0 %v653
        %871 = vmatmul.bf16.gmra.mxu0 %v861
        %v872 = vpop.f32.mrf.mxu0
        %v873 = vadd.f32 0.0, %v872
        %v874 = vpop.f32.mrf.mxu0
        %875 = vdwg.mxu0
        %876 = vmatpush.bf16.msra.mxu0 %v682
        %877 = vmatpush.bf16.msra.mxu0 %v678
        %878 = vmatpush.bf16.msra.mxu0 %v674
        %879 = vmatpush.bf16.msra.mxu0 %v670
        %880 = vmatpush.bf16.msra.mxu0 %v666
        %881 = vmatpush.bf16.msra.mxu0 %v662
        %882 = vmatpush.bf16.msra.mxu0 %v658
        %883 = vmatpush.bf16.msra.mxu0 %v654
        %884 = vmatmul.bf16.gmra.mxu0 %v861
        %v885 = vpop.f32.mrf.mxu0
        %v886 = vadd.f32 0.0, %v885
        %v887 = vpop.f32.mrf.mxu0
        %888 = vdwg.mxu0
        %889 = vmatpush.bf16.msra.mxu0 %v683
        %890 = vmatpush.bf16.msra.mxu0 %v679
        %891 = vmatpush.bf16.msra.mxu0 %v675
        %892 = vmatpush.bf16.msra.mxu0 %v671
        %893 = vmatpush.bf16.msra.mxu0 %v667
        %894 = vmatpush.bf16.msra.mxu0 %v663
        %895 = vmatpush.bf16.msra.mxu0 %v659
        %896 = vmatpush.bf16.msra.mxu0 %v655
        %897 = vmatmul.bf16.gmra.mxu0 %v861
        %v898 = vpop.f32.mrf.mxu0
        %v899 = vadd.f32 0.0, %v898
        %v900 = vpop.f32.mrf.mxu0
        %901 = vdwg.mxu0
        %902 = vmatpush.bf16.msra.mxu0 %v684
        %903 = vmatpush.bf16.msra.mxu0 %v680
        %904 = vmatpush.bf16.msra.mxu0 %v676
        %905 = vmatpush.bf16.msra.mxu0 %v672
        %906 = vmatpush.bf16.msra.mxu0 %v668
        %907 = vmatpush.bf16.msra.mxu0 %v664
        %908 = vmatpush.bf16.msra.mxu0 %v660
        %909 = vmatpush.bf16.msra.mxu0 %v656
        %910 = vmatmul.bf16.gmra.mxu0 %v861
        %v911 = vpop.f32.mrf.mxu0
        %v912 = vadd.f32 0.0, %v911
        %v913 = vpop.f32.mrf.mxu0
        %914 = vdwg.mxu0
        %v915 = vadd.f32 %v424, %v873
        %v916 = vadd.f32 %v453, %v886
        %v917 = vadd.f32 %v482, %v899
        %v918 = vadd.f32 %v511, %v912
        %v919 = vtanh.pop %v915
        %v920 = vtanh.pop %v916
        %v921 = vtanh.pop %v917
        %v922 = vtanh.pop %v918
        %v923 = vmul.f32 %v919, 0.5
        %v924 = vadd.f32 %v923, 0.5
        %v925 = vmul.f32 %v920, 0.5
        %v926 = vadd.f32 %v925, 0.5
        %v927 = vmul.f32 %v921, 0.5
        %v928 = vadd.f32 %v927, 0.5
        %v929 = vmul.f32 %v926, %v858
        %v930 = vmul.f32 %v924, %v922
        %v931 = vadd.f32 %v929, %v930
        %v932 = vtanh.pop %v931
        %v933 = vmul.f32 %v928, %v932
        %v934 = vpack.c.bf16 %v933, %v933
        %935 = vst [vmem:[#allocation2 + $0x8] sm:$0xf] %v934
        %936 = vmatpush.bf16.msra.mxu0 %v681
        %937 = vmatpush.bf16.msra.mxu0 %v677
        %938 = vmatpush.bf16.msra.mxu0 %v673
        %939 = vmatpush.bf16.msra.mxu0 %v669
        %940 = vmatpush.bf16.msra.mxu0 %v665
        %941 = vmatpush.bf16.msra.mxu0 %v661
        %942 = vmatpush.bf16.msra.mxu0 %v657
        %943 = vmatpush.bf16.msra.mxu0 %v653
        %944 = vmatmul.bf16.gmra.mxu0 %v934
        %v945 = vpop.f32.mrf.mxu0
        %v946 = vadd.f32 0.0, %v945
        %v947 = vpop.f32.mrf.mxu0
        %948 = vdwg.mxu0
        %949 = vmatpush.bf16.msra.mxu0 %v682
        %950 = vmatpush.bf16.msra.mxu0 %v678
        %951 = vmatpush.bf16.msra.mxu0 %v674
        %952 = vmatpush.bf16.msra.mxu0 %v670
        %953 = vmatpush.bf16.msra.mxu0 %v666
        %954 = vmatpush.bf16.msra.mxu0 %v662
        %955 = vmatpush.bf16.msra.mxu0 %v658
        %956 = vmatpush.bf16.msra.mxu0 %v654
        %957 = vmatmul.bf16.gmra.mxu0 %v934
        %v958 = vpop.f32.mrf.mxu0
        %v959 = vadd.f32 0.0, %v958
        %v960 = vpop.f32.mrf.mxu0
        %961 = vdwg.mxu0
        %962 = vmatpush.bf16.msra.mxu0 %v683
        %963 = vmatpush.bf16.msra.mxu0 %v679
        %964 = vmatpush.bf16.msra.mxu0 %v675
        %965 = vmatpush.bf16.msra.mxu0 %v671
        %966 = vmatpush.bf16.msra.mxu0 %v667
        %967 = vmatpush.bf16.msra.mxu0 %v663
        %968 = vmatpush.bf16.msra.mxu0 %v659
        %969 = vmatpush.bf16.msra.mxu0 %v655
        %970 = vmatmul.bf16.gmra.mxu0 %v934
        %v971 = vpop.f32.mrf.mxu0
        %v972 = vadd.f32 0.0, %v971
        %v973 = vpop.f32.mrf.mxu0
        %974 = vdwg.mxu0
        %975 = vmatpush.bf16.msra.mxu0 %v684
        %976 = vmatpush.bf16.msra.mxu0 %v680
        %977 = vmatpush.bf16.msra.mxu0 %v676
        %978 = vmatpush.bf16.msra.mxu0 %v672
        %979 = vmatpush.bf16.msra.mxu0 %v668
        %980 = vmatpush.bf16.msra.mxu0 %v664
        %981 = vmatpush.bf16.msra.mxu0 %v660
        %982 = vmatpush.bf16.msra.mxu0 %v656
        %983 = vmatmul.bf16.gmra.mxu0 %v934
        %v984 = vpop.f32.mrf.mxu0
        %v985 = vadd.f32 0.0, %v984
        %v986 = vpop.f32.mrf.mxu0
        %987 = vdwg.mxu0
        %v988 = vadd.f32 %v426, %v946
        %v989 = vadd.f32 %v455, %v959
        %v990 = vadd.f32 %v484, %v972
        %v991 = vadd.f32 %v513, %v985
        %v992 = vtanh.pop %v988
        %v993 = vtanh.pop %v989
        %v994 = vtanh.pop %v990
        %v995 = vtanh.pop %v991
        %v996 = vmul.f32 %v992, 0.5
        %v997 = vadd.f32 %v996, 0.5
        %v998 = vmul.f32 %v993, 0.5
        %v999 = vadd.f32 %v998, 0.5
        %v1000 = vmul.f32 %v994, 0.5
        %v1001 = vadd.f32 %v1000, 0.5
        %v1002 = vmul.f32 %v999, %v931
        %v1003 = vmul.f32 %v997, %v995
        %v1004 = vadd.f32 %v1002, %v1003
        %v1005 = vtanh.pop %v1004
        %v1006 = vmul.f32 %v1001, %v1005
        %v1007 = vpack.c.bf16 %v1006, %v1006
        %1008 = vst [vmem:[#allocation2 + $0xc] sm:$0xf] %v1007
        %1009 = vmatpush.bf16.msra.mxu0 %v681
        %1010 = vmatpush.bf16.msra.mxu0 %v677
        %1011 = vmatpush.bf16.msra.mxu0 %v673
        %1012 = vmatpush.bf16.msra.mxu0 %v669
        %1013 = vmatpush.bf16.msra.mxu0 %v665
        %1014 = vmatpush.bf16.msra.mxu0 %v661
        %1015 = vmatpush.bf16.msra.mxu0 %v657
        %1016 = vmatpush.bf16.msra.mxu0 %v653
        %1017 = vmatmul.bf16.gmra.mxu0 %v1007
        %v1018 = vpop.f32.mrf.mxu0
        %v1019 = vadd.f32 0.0, %v1018
        %v1020 = vpop.f32.mrf.mxu0
        %1021 = vdwg.mxu0
        %1022 = vmatpush.bf16.msra.mxu0 %v682
        %1023 = vmatpush.bf16.msra.mxu0 %v678
        %1024 = vmatpush.bf16.msra.mxu0 %v674
        %1025 = vmatpush.bf16.msra.mxu0 %v670
        %1026 = vmatpush.bf16.msra.mxu0 %v666
        %1027 = vmatpush.bf16.msra.mxu0 %v662
        %1028 = vmatpush.bf16.msra.mxu0 %v658
        %1029 = vmatpush.bf16.msra.mxu0 %v654
        %1030 = vmatmul.bf16.gmra.mxu0 %v1007
        %v1031 = vpop.f32.mrf.mxu0
        %v1032 = vadd.f32 0.0, %v1031
        %v1033 = vpop.f32.mrf.mxu0
        %1034 = vdwg.mxu0
        %1035 = vmatpush.bf16.msra.mxu0 %v683
        %1036 = vmatpush.bf16.msra.mxu0 %v679
        %1037 = vmatpush.bf16.msra.mxu0 %v675
        %1038 = vmatpush.bf16.msra.mxu0 %v671
        %1039 = vmatpush.bf16.msra.mxu0 %v667
        %1040 = vmatpush.bf16.msra.mxu0 %v663
        %1041 = vmatpush.bf16.msra.mxu0 %v659
        %1042 = vmatpush.bf16.msra.mxu0 %v655
        %1043 = vmatmul.bf16.gmra.mxu0 %v1007
        %v1044 = vpop.f32.mrf.mxu0
        %v1045 = vadd.f32 0.0, %v1044
        %v1046 = vpop.f32.mrf.mxu0
        %1047 = vdwg.mxu0
        %1048 = vmatpush.bf16.msra.mxu0 %v684
        %1049 = vmatpush.bf16.msra.mxu0 %v680
        %1050 = vmatpush.bf16.msra.mxu0 %v676
        %1051 = vmatpush.bf16.msra.mxu0 %v672
        %1052 = vmatpush.bf16.msra.mxu0 %v668
        %1053 = vmatpush.bf16.msra.mxu0 %v664
        %1054 = vmatpush.bf16.msra.mxu0 %v660
        %1055 = vmatpush.bf16.msra.mxu0 %v656
        %1056 = vmatmul.bf16.gmra.mxu0 %v1007
        %v1057 = vpop.f32.mrf.mxu0
        %v1058 = vadd.f32 0.0, %v1057
        %v1059 = vpop.f32.mrf.mxu0
        %1060 = vdwg.mxu0
        %v1061 = vadd.f32 %v429, %v1019
        %v1062 = vadd.f32 %v458, %v1032
        %v1063 = vadd.f32 %v487, %v1045
        %v1064 = vadd.f32 %v516, %v1058
        %v1065 = vtanh.pop %v1061
        %v1066 = vtanh.pop %v1062
        %v1067 = vtanh.pop %v1063
        %v1068 = vtanh.pop %v1064
        %v1069 = vmul.f32 %v1065, 0.5
        %v1070 = vadd.f32 %v1069, 0.5
        %v1071 = vmul.f32 %v1066, 0.5
        %v1072 = vadd.f32 %v1071, 0.5
        %v1073 = vmul.f32 %v1067, 0.5
        %v1074 = vadd.f32 %v1073, 0.5
        %v1075 = vmul.f32 %v1072, %v1004
        %v1076 = vmul.f32 %v1070, %v1068
        %v1077 = vadd.f32 %v1075, %v1076
        %v1078 = vtanh.pop %v1077
        %v1079 = vmul.f32 %v1074, %v1078
        %v1080 = vpack.c.bf16 %v1079, %v1079
        %1081 = vst [vmem:[#allocation2 + $0x10] sm:$0xf] %v1080
        %1082 = vmatpush.bf16.msra.mxu0 %v681
        %1083 = vmatpush.bf16.msra.mxu0 %v677
        %1084 = vmatpush.bf16.msra.mxu0 %v673
        %1085 = vmatpush.bf16.msra.mxu0 %v669
        %1086 = vmatpush.bf16.msra.mxu0 %v665
        %1087 = vmatpush.bf16.msra.mxu0 %v661
        %1088 = vmatpush.bf16.msra.mxu0 %v657
        %1089 = vmatpush.bf16.msra.mxu0 %v653
        %1090 = vmatmul.bf16.gmra.mxu0 %v1080
        %v1091 = vpop.f32.mrf.mxu0
        %v1092 = vadd.f32 0.0, %v1091
        %v1093 = vpop.f32.mrf.mxu0
        %1094 = vdwg.mxu0
        %1095 = vmatpush.bf16.msra.mxu0 %v682
        %1096 = vmatpush.bf16.msra.mxu0 %v678
        %1097 = vmatpush.bf16.msra.mxu0 %v674
        %1098 = vmatpush.bf16.msra.mxu0 %v670
        %1099 = vmatpush.bf16.msra.mxu0 %v666
        %1100 = vmatpush.bf16.msra.mxu0 %v662
        %1101 = vmatpush.bf16.msra.mxu0 %v658
        %1102 = vmatpush.bf16.msra.mxu0 %v654
        %1103 = vmatmul.bf16.gmra.mxu0 %v1080
        %v1104 = vpop.f32.mrf.mxu0
        %v1105 = vadd.f32 0.0, %v1104
        %v1106 = vpop.f32.mrf.mxu0
        %1107 = vdwg.mxu0
        %1108 = vmatpush.bf16.msra.mxu0 %v683
        %1109 = vmatpush.bf16.msra.mxu0 %v679
        %1110 = vmatpush.bf16.msra.mxu0 %v675
        %1111 = vmatpush.bf16.msra.mxu0 %v671
        %1112 = vmatpush.bf16.msra.mxu0 %v667
        %1113 = vmatpush.bf16.msra.mxu0 %v663
        %1114 = vmatpush.bf16.msra.mxu0 %v659
        %1115 = vmatpush.bf16.msra.mxu0 %v655
        %1116 = vmatmul.bf16.gmra.mxu0 %v1080
        %v1117 = vpop.f32.mrf.mxu0
        %v1118 = vadd.f32 0.0, %v1117
        %v1119 = vpop.f32.mrf.mxu0
        %1120 = vdwg.mxu0
        %1121 = vmatpush.bf16.msra.mxu0 %v684
        %1122 = vmatpush.bf16.msra.mxu0 %v680
        %1123 = vmatpush.bf16.msra.mxu0 %v676
        %1124 = vmatpush.bf16.msra.mxu0 %v672
        %1125 = vmatpush.bf16.msra.mxu0 %v668
        %1126 = vmatpush.bf16.msra.mxu0 %v664
        %1127 = vmatpush.bf16.msra.mxu0 %v660
        %1128 = vmatpush.bf16.msra.mxu0 %v656
        %1129 = vmatmul.bf16.gmra.mxu0 %v1080
        %v1130 = vpop.f32.mrf.mxu0
        %v1131 = vadd.f32 0.0, %v1130
        %v1132 = vpop.f32.mrf.mxu0
        %1133 = vdwg.mxu0
        %v1134 = vadd.f32 %v431, %v1092
        %v1135 = vadd.f32 %v460, %v1105
        %v1136 = vadd.f32 %v489, %v1118
        %v1137 = vadd.f32 %v518, %v1131
        %v1138 = vtanh.pop %v1134
        %v1139 = vtanh.pop %v1135
        %v1140 = vtanh.pop %v1136
        %v1141 = vtanh.pop %v1137
        %v1142 = vmul.f32 %v1138, 0.5
        %v1143 = vadd.f32 %v1142, 0.5
        %v1144 = vmul.f32 %v1139, 0.5
        %v1145 = vadd.f32 %v1144, 0.5
        %v1146 = vmul.f32 %v1140, 0.5
        %v1147 = vadd.f32 %v1146, 0.5
        %v1148 = vmul.f32 %v1145, %v1077
        %v1149 = vmul.f32 %v1143, %v1141
        %v1150 = vadd.f32 %v1148, %v1149
        %v1151 = vtanh.pop %v1150
        %v1152 = vmul.f32 %v1147, %v1151
        %v1153 = vpack.c.bf16 %v1152, %v1152
        %1154 = vst [vmem:[#allocation2 + $0x14] sm:$0xf] %v1153
        %1155 = vmatpush.bf16.msra.mxu0 %v681
        %1156 = vmatpush.bf16.msra.mxu0 %v677
        %1157 = vmatpush.bf16.msra.mxu0 %v673
        %1158 = vmatpush.bf16.msra.mxu0 %v669
        %1159 = vmatpush.bf16.msra.mxu0 %v665
        %1160 = vmatpush.bf16.msra.mxu0 %v661
        %1161 = vmatpush.bf16.msra.mxu0 %v657
        %1162 = vmatpush.bf16.msra.mxu0 %v653
        %1163 = vmatmul.bf16.gmra.mxu0 %v1153
        %v1164 = vpop.f32.mrf.mxu0
        %v1165 = vadd.f32 0.0, %v1164
        %v1166 = vpop.f32.mrf.mxu0
        %1167 = vdwg.mxu0
        %1168 = vmatpush.bf16.msra.mxu0 %v682
        %1169 = vmatpush.bf16.msra.mxu0 %v678
        %1170 = vmatpush.bf16.msra.mxu0 %v674
        %1171 = vmatpush.bf16.msra.mxu0 %v670
        %1172 = vmatpush.bf16.msra.mxu0 %v666
        %1173 = vmatpush.bf16.msra.mxu0 %v662
        %1174 = vmatpush.bf16.msra.mxu0 %v658
        %1175 = vmatpush.bf16.msra.mxu0 %v654
        %1176 = vmatmul.bf16.gmra.mxu0 %v1153
        %v1177 = vpop.f32.mrf.mxu0
        %v1178 = vadd.f32 0.0, %v1177
        %v1179 = vpop.f32.mrf.mxu0
        %1180 = vdwg.mxu0
        %1181 = vmatpush.bf16.msra.mxu0 %v683
        %1182 = vmatpush.bf16.msra.mxu0 %v679
        %1183 = vmatpush.bf16.msra.mxu0 %v675
        %1184 = vmatpush.bf16.msra.mxu0 %v671
        %1185 = vmatpush.bf16.msra.mxu0 %v667
        %1186 = vmatpush.bf16.msra.mxu0 %v663
        %1187 = vmatpush.bf16.msra.mxu0 %v659
        %1188 = vmatpush.bf16.msra.mxu0 %v655
        %1189 = vmatmul.bf16.gmra.mxu0 %v1153
        %v1190 = vpop.f32.mrf.mxu0
        %v1191 = vadd.f32 0.0, %v1190
        %v1192 = vpop.f32.mrf.mxu0
        %1193 = vdwg.mxu0
        %1194 = vmatpush.bf16.msra.mxu0 %v684
        %1195 = vmatpush.bf16.msra.mxu0 %v680
        %1196 = vmatpush.bf16.msra.mxu0 %v676
        %1197 = vmatpush.bf16.msra.mxu0 %v672
        %1198 = vmatpush.bf16.msra.mxu0 %v668
        %1199 = vmatpush.bf16.msra.mxu0 %v664
        %1200 = vmatpush.bf16.msra.mxu0 %v660
        %1201 = vmatpush.bf16.msra.mxu0 %v656
        %1202 = vmatmul.bf16.gmra.mxu0 %v1153
        %v1203 = vpop.f32.mrf.mxu0
        %v1204 = vadd.f32 0.0, %v1203
        %v1205 = vpop.f32.mrf.mxu0
        %1206 = vdwg.mxu0
        %v1207 = vadd.f32 %v434, %v1165
        %v1208 = vadd.f32 %v463, %v1178
        %v1209 = vadd.f32 %v492, %v1191
        %v1210 = vadd.f32 %v521, %v1204
        %v1211 = vtanh.pop %v1207
        %v1212 = vtanh.pop %v1208
        %v1213 = vtanh.pop %v1209
        %v1214 = vtanh.pop %v1210
        %v1215 = vmul.f32 %v1211, 0.5
        %v1216 = vadd.f32 %v1215, 0.5
        %v1217 = vmul.f32 %v1212, 0.5
        %v1218 = vadd.f32 %v1217, 0.5
        %v1219 = vmul.f32 %v1213, 0.5
        %v1220 = vadd.f32 %v1219, 0.5
        %v1221 = vmul.f32 %v1218, %v1150
        %v1222 = vmul.f32 %v1216, %v1214
        %v1223 = vadd.f32 %v1221, %v1222
        %v1224 = vtanh.pop %v1223
        %v1225 = vmul.f32 %v1220, %v1224
        %v1226 = vpack.c.bf16 %v1225, %v1225
        %1227 = vst [vmem:[#allocation2 + $0x18] sm:$0xf] %v1226
        %1228 = vmatpush.bf16.msra.mxu0 %v681
        %1229 = vmatpush.bf16.msra.mxu0 %v677
        %1230 = vmatpush.bf16.msra.mxu0 %v673
        %1231 = vmatpush.bf16.msra.mxu0 %v669
        %1232 = vmatpush.bf16.msra.mxu0 %v665
        %1233 = vmatpush.bf16.msra.mxu0 %v661
        %1234 = vmatpush.bf16.msra.mxu0 %v657
        %1235 = vmatpush.bf16.msra.mxu0 %v653
        %1236 = vmatmul.bf16.gmra.mxu0 %v1226
        %v1237 = vpop.f32.mrf.mxu0
        %v1238 = vadd.f32 0.0, %v1237
        %v1239 = vpop.f32.mrf.mxu0
        %1240 = vdwg.mxu0
        %1241 = vmatpush.bf16.msra.mxu0 %v682
        %1242 = vmatpush.bf16.msra.mxu0 %v678
        %1243 = vmatpush.bf16.msra.mxu0 %v674
        %1244 = vmatpush.bf16.msra.mxu0 %v670
        %1245 = vmatpush.bf16.msra.mxu0 %v666
        %1246 = vmatpush.bf16.msra.mxu0 %v662
        %1247 = vmatpush.bf16.msra.mxu0 %v658
        %1248 = vmatpush.bf16.msra.mxu0 %v654
        %1249 = vmatmul.bf16.gmra.mxu0 %v1226
        %v1250 = vpop.f32.mrf.mxu0
        %v1251 = vadd.f32 0.0, %v1250
        %v1252 = vpop.f32.mrf.mxu0
        %1253 = vdwg.mxu0
        %1254 = vmatpush.bf16.msra.mxu0 %v683
        %1255 = vmatpush.bf16.msra.mxu0 %v679
        %1256 = vmatpush.bf16.msra.mxu0 %v675
        %1257 = vmatpush.bf16.msra.mxu0 %v671
        %1258 = vmatpush.bf16.msra.mxu0 %v667
        %1259 = vmatpush.bf16.msra.mxu0 %v663
        %1260 = vmatpush.bf16.msra.mxu0 %v659
        %1261 = vmatpush.bf16.msra.mxu0 %v655
        %1262 = vmatmul.bf16.gmra.mxu0 %v1226
        %v1263 = vpop.f32.mrf.mxu0
        %v1264 = vadd.f32 0.0, %v1263
        %v1265 = vpop.f32.mrf.mxu0
        %1266 = vdwg.mxu0
        %1267 = vmatpush.bf16.msra.mxu0 %v684
        %1268 = vmatpush.bf16.msra.mxu0 %v680
        %1269 = vmatpush.bf16.msra.mxu0 %v676
        %1270 = vmatpush.bf16.msra.mxu0 %v672
        %1271 = vmatpush.bf16.msra.mxu0 %v668
        %1272 = vmatpush.bf16.msra.mxu0 %v664
        %1273 = vmatpush.bf16.msra.mxu0 %v660
        %1274 = vmatpush.bf16.msra.mxu0 %v656
        %1275 = vmatmul.bf16.gmra.mxu0 %v1226
        %v1276 = vpop.f32.mrf.mxu0
        %v1277 = vadd.f32 0.0, %v1276
        %v1278 = vpop.f32.mrf.mxu0
        %1279 = vdwg.mxu0
        %v1280 = vadd.f32 %v436, %v1238
        %v1281 = vadd.f32 %v465, %v1251
        %v1282 = vadd.f32 %v494, %v1264
        %v1283 = vadd.f32 %v523, %v1277
        %v1284 = vtanh.pop %v1280
        %v1285 = vtanh.pop %v1281
        %v1286 = vtanh.pop %v1282
        %v1287 = vtanh.pop %v1283
        %v1288 = vmul.f32 %v1284, 0.5
        %v1289 = vadd.f32 %v1288, 0.5
        %v1290 = vmul.f32 %v1285, 0.5
        %v1291 = vadd.f32 %v1290, 0.5
        %v1292 = vmul.f32 %v1286, 0.5
        %v1293 = vadd.f32 %v1292, 0.5
        %v1294 = vmul.f32 %v1291, %v1223
        %v1295 = vmul.f32 %v1289, %v1287
        %v1296 = vadd.f32 %v1294, %v1295
        %v1297 = vtanh.pop %v1296
        %v1298 = vmul.f32 %v1293, %v1297
        %v1299 = vpack.c.bf16 %v1298, %v1298
        %1300 = vst [vmem:[#allocation2 + $0x1c] sm:$0xf] %v1299
        %v1301 = vld [vmem:[#allocation2] sm:$0xf]
        %v1302 = vld [vmem:[#allocation2 + $0x4] sm:$0xf]
        %v1303 = vld [vmem:[#allocation2 + $0x8] sm:$0xf]
        %v1304 = vld [vmem:[#allocation2 + $0xc] sm:$0xf]
        %v1305 = vld [vmem:[#allocation2 + $0x10] sm:$0xf]
        %v1306 = vld [vmem:[#allocation2 + $0x14] sm:$0xf]
        %v1307 = vld [vmem:[#allocation2 + $0x18] sm:$0xf]
        %v1308 = vld [vmem:[#allocation2 + $0x1c] sm:$0xf]
        %v1309 = vld [vmem:[%s3] sm:$0xf]
        %v1310 = vld [vmem:[%s3 + $0x4] sm:$0xf]
        %v1311 = vld [vmem:[%s3 + $0x8] sm:$0xf]
        %v1312 = vld [vmem:[%s3 + $0xc] sm:$0xf]
        %v1313 = vld [vmem:[%s3 + $0x10] sm:$0xf]
        %v1314 = vld [vmem:[%s3 + $0x14] sm:$0xf]
        %v1315 = vld [vmem:[%s3 + $0x18] sm:$0xf]
        %v1316 = vld [vmem:[%s3 + $0x1c] sm:$0xf]
        %v1317 = vld [vmem:[%s3 + $0x20] sm:$0xf]
        %v1318 = vld [vmem:[%s3 + $0x24] sm:$0xf]
        %v1319 = vld [vmem:[%s3 + $0x28] sm:$0xf]
        %v1320 = vld [vmem:[%s3 + $0x2c] sm:$0xf]
        %v1321 = vld [vmem:[%s3 + $0x30] sm:$0xf]
        %v1322 = vld [vmem:[%s3 + $0x34] sm:$0xf]
        %v1323 = vld [vmem:[%s3 + $0x38] sm:$0xf]
        %v1324 = vld [vmem:[%s3 + $0x3c] sm:$0xf]
        %v1325 = vld [vmem:[%s4] sm:$0x1]
        %v1327 = vperm.slane %v1325, 0
        %v1337 = vunpack.c.l.b16 %v1301
        %v1338 = vunpack.c.l.b16 %v1302
        %v1339 = vunpack.c.l.b16 %v1303
        %v1340 = vunpack.c.l.b16 %v1304
        %v1341 = vunpack.c.l.b16 %v1305
        %v1342 = vunpack.c.l.b16 %v1306
        %v1343 = vunpack.c.l.b16 %v1307
        %v1344 = vunpack.c.l.b16 %v1308
        %v1345 = vpack.c.b16 %v1338, %v1337
        %v1346 = vpack.c.b16 %v1340, %v1339
        %v1347 = vpack.c.b16 %v1342, %v1341
        %v1348 = vpack.c.b16 %v1344, %v1343
        %v1369 = vunpack.c.l.b16 %v1309
        %v1370 = vunpack.c.l.b16 %v1310
        %v1371 = vunpack.c.l.b16 %v1311
        %v1372 = vunpack.c.l.b16 %v1312
        %v1373 = vunpack.c.l.b16 %v1313
        %v1374 = vunpack.c.l.b16 %v1314
        %v1375 = vunpack.c.l.b16 %v1315
        %v1376 = vunpack.c.l.b16 %v1316
        %v1377 = vunpack.c.l.b16 %v1317
        %v1378 = vunpack.c.l.b16 %v1318
        %v1379 = vunpack.c.l.b16 %v1319
        %v1380 = vunpack.c.l.b16 %v1320
        %v1381 = vunpack.c.l.b16 %v1321
        %v1382 = vunpack.c.l.b16 %v1322
        %v1383 = vunpack.c.l.b16 %v1323
        %v1384 = vunpack.c.l.b16 %v1324
        %v1385 = vpack.c.b16 %v1370, %v1369
        %v1386 = vpack.c.b16 %v1372, %v1371
        %v1387 = vpack.c.b16 %v1374, %v1373
        %v1388 = vpack.c.b16 %v1376, %v1375
        %v1389 = vpack.c.b16 %v1378, %v1377
        %v1390 = vpack.c.b16 %v1380, %v1379
        %v1391 = vpack.c.b16 %v1382, %v1381
        %v1392 = vpack.c.b16 %v1384, %v1383
        %1401 = vmatpush.bf16.msra.mxu0 %v1392
        %1402 = vmatpush.bf16.msra.mxu0 %v1391
        %1403 = vmatpush.bf16.msra.mxu0 %v1390
        %1404 = vmatpush.bf16.msra.mxu0 %v1389
        %1405 = vmatpush.bf16.msra.mxu0 %v1388
        %1406 = vmatpush.bf16.msra.mxu0 %v1387
        %1407 = vmatpush.bf16.msra.mxu0 %v1386
        %1408 = vmatpush.bf16.msra.mxu0 %v1385
        %1409 = vmatmul.bf16.gmra.mxu0 %v1345
        %v1410 = vpop.f32.mrf.mxu0
        %v1411 = vadd.f32 %v1327, %v1410
        %v1412 = vpop.f32.mrf.mxu0
        %v1413 = vadd.f32 %v1327, %v1412
        %1414 = vmatmul.bf16.gmra.mxu0 %v1346
        %v1415 = vpop.f32.mrf.mxu0
        %v1416 = vadd.f32 %v1327, %v1415
        %v1417 = vpop.f32.mrf.mxu0
        %v1418 = vadd.f32 %v1327, %v1417
        %1419 = vmatmul.bf16.gmra.mxu0 %v1347
        %v1420 = vpop.f32.mrf.mxu0
        %v1421 = vadd.f32 %v1327, %v1420
        %v1422 = vpop.f32.mrf.mxu0
        %v1423 = vadd.f32 %v1327, %v1422
        %1424 = vmatmul.bf16.gmra.mxu0 %v1348
        %v1425 = vpop.f32.mrf.mxu0
        %v1426 = vadd.f32 %v1327, %v1425
        %v1427 = vpop.f32.mrf.mxu0
        %v1428 = vadd.f32 %v1327, %v1427
        %1429 = vdwg.mxu0
        %1430 = vmax.xlane.f32.xlu0 %v1411
        %v1431 = vpop.xlane.xlu0 %1430
        %1432 = vmax.xlane.f32.xlu0 %v1413
        %v1433 = vpop.xlane.xlu0 %1432
        %1434 = vmax.xlane.f32.xlu0 %v1416
        %v1435 = vpop.xlane.xlu0 %1434
        %1436 = vmax.xlane.f32.xlu0 %v1418
        %v1437 = vpop.xlane.xlu0 %1436
        %1438 = vmax.xlane.f32.xlu0 %v1421
        %v1439 = vpop.xlane.xlu0 %1438
        %1440 = vmax.xlane.f32.xlu0 %v1423
        %v1441 = vpop.xlane.xlu0 %1440
        %1442 = vmax.xlane.f32.xlu0 %v1426
        %v1443 = vpop.xlane.xlu0 %1442
        %1444 = vmax.xlane.f32.xlu0 %v1428
        %v1445 = vpop.xlane.xlu0 %1444
        %v1446 = vsub.f32 %v1411, %v1431
        %v1447 = vsub.f32 %v1413, %v1433
        %v1448 = vsub.f32 %v1416, %v1435
        %v1449 = vsub.f32 %v1418, %v1437
        %v1450 = vsub.f32 %v1421, %v1439
        %v1451 = vsub.f32 %v1423, %v1441
        %v1452 = vsub.f32 %v1426, %v1443
        %v1453 = vsub.f32 %v1428, %v1445
        %v1454 = vmul.f32 %v1446, 1.442695
        %v1455 = vpow.pop %v1454
        %v1456 = vmul.f32 %v1447, 1.442695
        %v1457 = vpow.pop %v1456
        %v1458 = vmul.f32 %v1448, 1.442695
        %v1459 = vpow.pop %v1458
        %v1460 = vmul.f32 %v1449, 1.442695
        %v1461 = vpow.pop %v1460
        %v1462 = vmul.f32 %v1450, 1.442695
        %v1463 = vpow.pop %v1462
        %v1464 = vmul.f32 %v1451, 1.442695
        %v1465 = vpow.pop %v1464
        %v1466 = vmul.f32 %v1452, 1.442695
        %v1467 = vpow.pop %v1466
        %v1468 = vmul.f32 %v1453, 1.442695
        %v1469 = vpow.pop %v1468
        %1470 = vadd.xlane.f32.xlu0 %v1455
        %v1471 = vpop.xlane.xlu0 %1470
        %1472 = vadd.xlane.f32.xlu0 %v1457
        %v1473 = vpop.xlane.xlu0 %1472
        %1474 = vadd.xlane.f32.xlu0 %v1459
        %v1475 = vpop.xlane.xlu0 %1474
        %1476 = vadd.xlane.f32.xlu0 %v1461
        %v1477 = vpop.xlane.xlu0 %1476
        %1478 = vadd.xlane.f32.xlu0 %v1463
        %v1479 = vpop.xlane.xlu0 %1478
        %1480 = vadd.xlane.f32.xlu0 %v1465
        %v1481 = vpop.xlane.xlu0 %1480
        %1482 = vadd.xlane.f32.xlu0 %v1467
        %v1483 = vpop.xlane.xlu0 %1482
        %1484 = vadd.xlane.f32.xlu0 %v1469
        %v1485 = vpop.xlane.xlu0 %1484
        %v1486 = vlog2.pop %v1471
        %v1487 = vmul.f32 %v1486, 0.6931472
        %v1488 = vlog2.pop %v1473
        %v1489 = vmul.f32 %v1488, 0.6931472
        %v1490 = vlog2.pop %v1475
        %v1491 = vmul.f32 %v1490, 0.6931472
        %v1492 = vlog2.pop %v1477
        %v1493 = vmul.f32 %v1492, 0.6931472
        %v1494 = vlog2.pop %v1479
        %v1495 = vmul.f32 %v1494, 0.6931472
        %v1496 = vlog2.pop %v1481
        %v1497 = vmul.f32 %v1496, 0.6931472
        %v1498 = vlog2.pop %v1483
        %v1499 = vmul.f32 %v1498, 0.6931472
        %v1500 = vlog2.pop %v1485
        %v1501 = vmul.f32 %v1500, 0.6931472
        %v1502 = vsub.f32 %v1446, %v1487
        %v1503 = vsub.f32 %v1447, %v1489
        %v1504 = vsub.f32 %v1448, %v1491
        %v1505 = vsub.f32 %v1449, %v1493
        %v1506 = vsub.f32 %v1450, %v1495
        %v1507 = vsub.f32 %v1451, %v1497
        %v1508 = vsub.f32 %v1452, %v1499
        %v1509 = vsub.f32 %v1453, %v1501
        %1510 = vst [vmem:[%s243] sm:$0xff] %v1502
        %1511 = vst [vmem:[%s243 + $0x8] sm:$0xff] %v1503
        %1512 = vst [vmem:[%s243 + $0x10] sm:$0xff] %v1504
        %1513 = vst [vmem:[%s243 + $0x18] sm:$0xff] %v1505
        %1514 = vst [vmem:[%s243 + $0x20] sm:$0xff] %v1506
        %1515 = vst [vmem:[%s243 + $0x28] sm:$0xff] %v1507
        %1516 = vst [vmem:[%s243 + $0x30] sm:$0xff] %v1508
        %1517 = vst [vmem:[%s243 + $0x38] sm:$0xff] %v1509
        %s1518 = smul.u32 8, %s17
        %p1519 = scmp.lt.s32.totalorder %s1518, 15
        %s1520 = scalar_select %p1519, %s1518, 15
        %s1521 = smul.addr %s1520, 8
        %s1522 = scalar_lea.vmem %s5, %s1521
        // Predicated region
        $region45: #{_forward_batch_impl.1} parent=39 // pred_check
          %p1523 = pneg %p145
        $region46: #{_forward_batch_impl.1} parent=39 // pred_check_branch
          %1525 = sbr.rel (%p1523) target = $region48
        $region47: #{_forward_batch_impl.1} parent=39 // pred_region
          %s1526 = smul.u32 8, %s17
        $region48: #{_forward_batch_impl.1} parent=39 // pred_fallthru
          _
      $region40: #{_forward_batch_impl.1} parent=5 // pred_fallthru
        _
      %p1527 = scmp.le.s32.totalorder 2, %s12
      // Predicated region
      $region49: #{_forward_batch_impl.1} parent=5 // pred_check
        %p1528 = pneg %p1527
      $region50: #{_forward_batch_impl.1} parent=5 // pred_check_branch
        %1530 = sbr.rel (%p1528) target = $region52
      $region51: #{_forward_batch_impl.1} parent=5 // pred_region
        %s1531 = ssub.s32 %s12, 2
        // Predicated region
        $region53: #{_forward_batch_impl.1} parent=51 // pred_check
          %p1532 = pneg %p151
        $region54: #{_forward_batch_impl.1} parent=51 // pred_check_branch
          %1534 = sbr.rel (%p1532) target = $region56
        $region55: #{_forward_batch_impl.1} parent=51 // pred_region
          %s1535 = smul.u32 8, %s18
          %p1536 = scmp.lt.s32.totalorder %s1535, 15
          %s1537 = scalar_select %p1536, %s1535, 15
          %s1538 = smul.addr %s1537, 8
          %s1539 = scalar_lea.vmem %s5, %s1538
        $region56: #{_forward_batch_impl.1} parent=51 // pred_fallthru
          _
      $region52: #{_forward_batch_impl.1} parent=5 // pred_fallthru
        _
    $region6: #{_forward_batch_impl.1} parent=1 // loop_footer
      %s16 = sadd.s32 1, %s12
    $region7: #{_forward_batch_impl.1} parent=1 // loop_footer_branch
      %11 = sbr.rel target = $region3
    $region8: #{_forward_batch_impl.1} parent=1 // loop_exit
      _
    %1540 = vsyncpa [#allocation4], 1
    %s1541 = scalar_lea.sflag [#allocation4], 1
    %1542 = vsyncpa %s1541, 1

</llo_original>
